<compile_context>
chip_gen: v7x
topology: tpu7x:2x2x1
jax: 0.10.0
libtpu: 0.0.40
codegen_flags: <defaults>
</compile_context>

<pallas_src>
import jax
import jax.numpy as jnp
from jax.experimental import pallas as pl
from jax.experimental.pallas import tpu as pltpu


def _rpn_head_kernel(xcol_ref, wconv_ref, bconv_ref, whead_ref, bhead_ref,
                     out_ref, acc_ref):
    # xcol_ref : (1, H+2, W, 3C)  kw-im2col'd, H/W-padded NHWC slab (compute dtype)
    # wconv_ref: (3, 3C, C)       3x3 conv weight, kw folded into the K dim
    # bconv_ref: (1, C)   f32
    # whead_ref: (C, 5A)          fused [cls | box] 1x1 conv weights
    # bhead_ref: (1, 5A)  f32
    # out_ref  : (1, H, W, 5A)    f32 fused output (split into cls/box outside)
    # acc_ref  : VMEM (H*W, C)    f32 scratch accumulator for the 3x3 conv
    H = out_ref.shape[1]
    W = out_ref.shape[2]
    C = wconv_ref.shape[2]
    AH = out_ref.shape[3]

    acc_ref[...] = jnp.zeros_like(acc_ref)
    # 3x3 conv (pad=1, stride=1) = 3 wide-K matmuls, one per kh (dy) tap.
    for dy in range(3):
        patch = xcol_ref[0, dy:dy + H, :, :].reshape(H * W, 3 * C)
        acc_ref[...] += jnp.dot(patch, wconv_ref[dy],
                                preferred_element_type=jnp.float32)

    t = jnp.maximum(acc_ref[...] + bconv_ref[...], 0.0)       # relu(conv(x)), f32

    # Fused cls_logits + bbox_pred: single (H*W, C) x (C, 5A) matmul.
    head = jnp.dot(t.astype(whead_ref.dtype), whead_ref[...],
                   preferred_element_type=jnp.float32) + bhead_ref[...]

    out_ref[...] = head.reshape(1, H, W, AH).astype(out_ref.dtype)


def rpn_head_single_level(x_nchw, params, *, compute_dtype=jnp.bfloat16):
    """Run the RPN head on one feature level.  x_nchw: (B, C, H, W) float32."""
    w_conv, b_conv, w_cls, b_cls, w_box, b_box = params
    B, C, H, W = x_nchw.shape
    A = w_cls.shape[0]           # num_anchors
    A4 = w_box.shape[0]          # num_anchors * 4
    AH = A + A4                  # fused head width (5A) -> lane-denser output

    # NCHW -> NHWC, spatial pad (conv padding=1), then kw (dx) im2col so the
    # kernel only slices along dy:  xcol[..., y, x, dx*C + c] = xpad[..., y, x+dx, c]
    x_nhwc = jnp.transpose(x_nchw, (0, 2, 3, 1)).astype(compute_dtype)
    x_pad = jnp.pad(x_nhwc, ((0, 0), (1, 1), (1, 1), (0, 0)))
    x_col = jnp.concatenate(
        [x_pad[:, :, 0:W, :], x_pad[:, :, 1:W + 1, :], x_pad[:, :, 2:W + 2, :]],
        axis=-1)                                             # (B, H+2, W, 3C)

    # PyTorch conv weights (cout, cin, kh, kw) -> kernel layouts.
    # (kh, kw, cin, cout) -> (kh, kw*cin, cout) matches the x_col channel order.
    w_conv_k = jnp.transpose(w_conv, (2, 3, 1, 0)).reshape(3, 3 * C, C)
    w_conv_k = w_conv_k.astype(compute_dtype)
    w_head = jnp.concatenate([w_cls.reshape(A, C), w_box.reshape(A4, C)], axis=0)
    w_head_k = jnp.transpose(w_head, (1, 0)).astype(compute_dtype)      # (C, 5A)
    b_conv_k = b_conv.reshape(1, C).astype(jnp.float32)
    b_head_k = jnp.concatenate([b_cls, b_box]).reshape(1, AH).astype(jnp.float32)

    # Raise the scoped VMEM limit when blocks outgrow the 16/32 MiB defaults;
    # clamp at 64 MiB so the setting stays valid on v7x (64 MiB physical VMEM).
    itemsize = jnp.dtype(compute_dtype).itemsize
    block_bytes = 2 * ((H + 2) * W * 3 * C * itemsize + H * W * AH * 4)   # dbl-buffered in/out
    block_bytes += (3 * 3 * C * C + C * AH) * itemsize + H * W * C * 4    # weights + acc
    vmem_limit = int(min(max(block_bytes + (8 << 20), 32 << 20), 64 << 20))

    out = pl.pallas_call(
        _rpn_head_kernel,
        out_shape=jax.ShapeDtypeStruct((B, H, W, AH), jnp.float32),
        grid_spec=pltpu.PrefetchScalarGridSpec(
            num_scalar_prefetch=0,
            grid=(B,),
            in_specs=[
                pl.BlockSpec((1, H + 2, W, 3 * C), lambda b: (b, 0, 0, 0)),
                pl.BlockSpec((3, 3 * C, C), lambda b: (0, 0, 0)),
                pl.BlockSpec((1, C), lambda b: (0, 0)),
                pl.BlockSpec((C, AH), lambda b: (0, 0)),
                pl.BlockSpec((1, AH), lambda b: (0, 0)),
            ],
            out_specs=pl.BlockSpec((1, H, W, AH), lambda b: (b, 0, 0, 0)),
            scratch_shapes=[pltpu.VMEM((H * W, C), jnp.float32)],
        ),
        compiler_params=pltpu.CompilerParams(
            dimension_semantics=("parallel",),   # B>=2 keeps both v7x TCs busy
            vmem_limit_bytes=vmem_limit,
        ),
    )(x_col, w_conv_k, b_conv_k, w_head_k, b_head_k)

    # Split fused head and return NCHW to match the PyTorch convention.
    logits = jnp.transpose(out[..., :A], (0, 3, 1, 2))
    bbox = jnp.transpose(out[..., A:], (0, 3, 1, 2))
    return logits, bbox


def rpn_head_forward(features, params, *, compute_dtype=jnp.bfloat16):
    """features: list of NCHW arrays -> (list of logits, list of bbox_reg)."""
    logits, bbox_reg = [], []
    for feature in features:
        l, b = rpn_head_single_level(feature, params,
                                     compute_dtype=compute_dtype)
        logits.append(l)
        bbox_reg.append(b)
    return logits, bbox_reg


def init_rpn_head_params(key, in_channels, num_anchors):
    """Deterministic init matching nn.init.normal_(std=0.01) / constant_(0)."""
    k1, k2, k3 = jax.random.split(key, 3)
    w_conv = 0.01 * jax.random.normal(k1, (in_channels, in_channels, 3, 3), jnp.float32)
    b_conv = jnp.zeros((in_channels,), jnp.float32)
    w_cls = 0.01 * jax.random.normal(k2, (num_anchors, in_channels, 1, 1), jnp.float32)
    b_cls = jnp.zeros((num_anchors,), jnp.float32)
    w_box = 0.01 * jax.random.normal(k3, (num_anchors * 4, in_channels, 1, 1), jnp.float32)
    b_box = jnp.zeros((num_anchors * 4,), jnp.float32)
    return (w_conv, b_conv, w_cls, b_cls, w_box, b_box)


def _reference_single_level(x_nchw, params):
    """Pure-JAX reference (lax conv, f32) for correctness checking."""
    w_conv, b_conv, w_cls, b_cls, w_box, b_box = params
    dn = jax.lax.conv_dimension_numbers(x_nchw.shape, w_conv.shape,
                                        ("NCHW", "OIHW", "NCHW"))
    t = jax.lax.conv_general_dilated(x_nchw, w_conv, (1, 1), "SAME",
                                     dimension_numbers=dn)
    t = jax.nn.relu(t + b_conv[None, :, None, None])
    cls = jax.lax.conv_general_dilated(t, w_cls, (1, 1), "VALID",
                                       dimension_numbers=dn)
    cls = cls + b_cls[None, :, None, None]
    box = jax.lax.conv_general_dilated(t, w_box, (1, 1), "VALID",
                                       dimension_numbers=dn)
    box = box + b_box[None, :, None, None]
    return cls, box


if __name__ == "__main__":
    key = jax.random.PRNGKey(0)
    k_param, k_feat0, k_feat1 = jax.random.split(key, 3)

    in_channels = 16
    num_anchors = 4

    params = init_rpn_head_params(k_param, in_channels, num_anchors)

    # Two feature levels (FPN-style list input), NCHW.
    feat0 = jax.random.normal(k_feat0, (2, in_channels, 16, 16), jnp.float32)
    feat1 = jax.random.normal(k_feat1, (2, in_channels, 8, 8), jnp.float32)
    features = [feat0, feat1]

    # Default (bf16 MXU operands, f32 accumulation) path.
    logits_bf, bbox_bf = rpn_head_forward(features, params)
    logits_bf = [jax.block_until_ready(l) for l in logits_bf]
    bbox_bf = [jax.block_until_ready(b) for b in bbox_bf]

    # f32 path exercises the same kernel for a tight numerical check.
    logits_32, bbox_32 = rpn_head_forward(features, params,
                                          compute_dtype=jnp.float32)
    logits_32 = [jax.block_until_ready(l) for l in logits_32]
    bbox_32 = [jax.block_until_ready(b) for b in bbox_32]

    for feat, l32, b32, lbf, bbf in zip(features, logits_32, bbox_32,
                                        logits_bf, bbox_bf):
        l_ref, b_ref = _reference_single_level(feat, params)
        # Exact-structure check (f32 everywhere).
        assert jnp.allclose(l32, l_ref, atol=1e-4, rtol=1e-4)
        assert jnp.allclose(b32, b_ref, atol=1e-4, rtol=1e-4)
        # bf16-operand path: looser tolerance (f32 accumulation retained).
        assert jnp.allclose(lbf, l_ref, atol=2e-3, rtol=5e-2)
        assert jnp.allclose(bbf, b_ref, atol=2e-3, rtol=5e-2)
        assert l32.shape == (feat.shape[0], num_anchors,
                             feat.shape[2], feat.shape[3])
        assert b32.shape == (feat.shape[0], num_anchors * 4,
                             feat.shape[2], feat.shape[3])

    print("KERNEL_OK")
</pallas_src>

<mosaic_0001>
module attributes {stable_mosaic.version = 11 : i64} {
  func.func @_rpn_head_kernel(%arg0: i32, %arg1: memref<1x18x16x48xbf16, #tpu.memory_space<vmem>>, %arg2: memref<3x48x16xbf16, #tpu.memory_space<vmem>>, %arg3: memref<1x16xf32, #tpu.memory_space<vmem>>, %arg4: memref<16x20xbf16, #tpu.memory_space<vmem>>, %arg5: memref<1x20xf32, #tpu.memory_space<vmem>>, %arg6: memref<1x16x16x20xf32, #tpu.memory_space<vmem>>, %arg7: memref<256x16xf32, #tpu.memory_space<vmem>>) attributes {dimension_semantics = [#tpu.dimension_semantics<parallel>], iteration_bounds = array<i64: 2>, scalar_prefetch = 0 : i64, scratch_operands = 1 : i64, tpu.core_type = #tpu.core_type<tc>, window_params = [{transform_indices = @transform_0, window_bounds = array<i64: 1, 18, 16, 48>}, {pipeline_mode = #tpu.pipeline_mode<synchronous>, transform_indices = @transform_1, window_bounds = array<i64: 3, 48, 16>}, {pipeline_mode = #tpu.pipeline_mode<synchronous>, transform_indices = @transform_2, window_bounds = array<i64: 1, 16>}, {pipeline_mode = #tpu.pipeline_mode<synchronous>, transform_indices = @transform_3, window_bounds = array<i64: 16, 20>}, {pipeline_mode = #tpu.pipeline_mode<synchronous>, transform_indices = @transform_4, window_bounds = array<i64: 1, 20>}, {transform_indices = @transform_5, window_bounds = array<i64: 1, 16, 16, 20>}]} {
    %cst = arith.constant 0.000000e+00 : f32
    %0 = vector.broadcast %cst : f32 to vector<256x16xf32>
    %c0 = arith.constant 0 : index
    %c0_0 = arith.constant 0 : index
    %1 = vector.load %arg7[%c0, %c0_0] : memref<256x16xf32, #tpu.memory_space<vmem>>, vector<256x16xf32>
    tpu.vector_store %arg7[%c0, %c0_0], %0 {strides = array<i32>} : memref<256x16xf32, #tpu.memory_space<vmem>>, vector<256x16xf32>,
    %c0_1 = arith.constant 0 : index
    %c0_2 = arith.constant 0 : index
    %c0_3 = arith.constant 0 : index
    %c0_4 = arith.constant 0 : index
    %2 = vector.load %arg1[%c0_1, %c0_2, %c0_3, %c0_4] : memref<1x18x16x48xbf16, #tpu.memory_space<vmem>>, vector<1x16x16x48xbf16>
    %3 = vector.shape_cast %2 : vector<1x16x16x48xbf16> to vector<16x16x48xbf16>
    %4 = vector.shape_cast %3 : vector<16x16x48xbf16> to vector<256x48xbf16>
    %c0_5 = arith.constant 0 : index
    %c0_6 = arith.constant 0 : index
    %5 = vector.load %arg7[%c0_5, %c0_6] : memref<256x16xf32, #tpu.memory_space<vmem>>, vector<256x16xf32>
    %c0_7 = arith.constant 0 : index
    %c0_8 = arith.constant 0 : index
    %c0_9 = arith.constant 0 : index
    %6 = vector.load %arg2[%c0_7, %c0_8, %c0_9] : memref<3x48x16xbf16, #tpu.memory_space<vmem>>, vector<1x48x16xbf16>
    %7 = vector.shape_cast %6 : vector<1x48x16xbf16> to vector<48x16xbf16>
    %cst_10 = arith.constant dense<0.000000e+00> : vector<256x16xf32>
    %8 = tpu.matmul %4, %7, %cst_10 {dimension_numbers = #tpu.dot_dimension_numbers<[1], [0], [0], [1], [0, 0, 1, 1], [], []>} : vector<256x48xbf16>, vector<48x16xbf16>, vector<256x16xf32> -> vector<256x16xf32>
    %9 = arith.addf %5, %8 : vector<256x16xf32>
    %c0_11 = arith.constant 0 : index
    %c0_12 = arith.constant 0 : index
    %10 = vector.load %arg7[%c0_11, %c0_12] : memref<256x16xf32, #tpu.memory_space<vmem>>, vector<256x16xf32>
    tpu.vector_store %arg7[%c0_11, %c0_12], %9 {strides = array<i32>} : memref<256x16xf32, #tpu.memory_space<vmem>>, vector<256x16xf32>,
    %c0_13 = arith.constant 0 : index
    %c1 = arith.constant 1 : index
    %c0_14 = arith.constant 0 : index
    %c0_15 = arith.constant 0 : index
    %11 = vector.load %arg1[%c0_13, %c1, %c0_14, %c0_15] : memref<1x18x16x48xbf16, #tpu.memory_space<vmem>>, vector<1x16x16x48xbf16>
    %12 = vector.shape_cast %11 : vector<1x16x16x48xbf16> to vector<16x16x48xbf16>
    %13 = vector.shape_cast %12 : vector<16x16x48xbf16> to vector<256x48xbf16>
    %c0_16 = arith.constant 0 : index
    %c0_17 = arith.constant 0 : index
    %14 = vector.load %arg7[%c0_16, %c0_17] : memref<256x16xf32, #tpu.memory_space<vmem>>, vector<256x16xf32>
    %c1_18 = arith.constant 1 : index
    %c0_19 = arith.constant 0 : index
    %c0_20 = arith.constant 0 : index
    %15 = vector.load %arg2[%c1_18, %c0_19, %c0_20] : memref<3x48x16xbf16, #tpu.memory_space<vmem>>, vector<1x48x16xbf16>
    %16 = vector.shape_cast %15 : vector<1x48x16xbf16> to vector<48x16xbf16>
    %cst_21 = arith.constant dense<0.000000e+00> : vector<256x16xf32>
    %17 = tpu.matmul %13, %16, %cst_21 {dimension_numbers = #tpu.dot_dimension_numbers<[1], [0], [0], [1], [0, 0, 1, 1], [], []>} : vector<256x48xbf16>, vector<48x16xbf16>, vector<256x16xf32> -> vector<256x16xf32>
    %18 = arith.addf %14, %17 : vector<256x16xf32>
    %c0_22 = arith.constant 0 : index
    %c0_23 = arith.constant 0 : index
    %19 = vector.load %arg7[%c0_22, %c0_23] : memref<256x16xf32, #tpu.memory_space<vmem>>, vector<256x16xf32>
    tpu.vector_store %arg7[%c0_22, %c0_23], %18 {strides = array<i32>} : memref<256x16xf32, #tpu.memory_space<vmem>>, vector<256x16xf32>,
    %c0_24 = arith.constant 0 : index
    %c2 = arith.constant 2 : index
    %c0_25 = arith.constant 0 : index
    %c0_26 = arith.constant 0 : index
    %20 = vector.load %arg1[%c0_24, %c2, %c0_25, %c0_26] : memref<1x18x16x48xbf16, #tpu.memory_space<vmem>>, vector<1x16x16x48xbf16>
    %21 = vector.shape_cast %20 : vector<1x16x16x48xbf16> to vector<16x16x48xbf16>
    %22 = vector.shape_cast %21 : vector<16x16x48xbf16> to vector<256x48xbf16>
    %c0_27 = arith.constant 0 : index
    %c0_28 = arith.constant 0 : index
    %23 = vector.load %arg7[%c0_27, %c0_28] : memref<256x16xf32, #tpu.memory_space<vmem>>, vector<256x16xf32>
    %c2_29 = arith.constant 2 : index
    %c0_30 = arith.constant 0 : index
    %c0_31 = arith.constant 0 : index
    %24 = vector.load %arg2[%c2_29, %c0_30, %c0_31] : memref<3x48x16xbf16, #tpu.memory_space<vmem>>, vector<1x48x16xbf16>
    %25 = vector.shape_cast %24 : vector<1x48x16xbf16> to vector<48x16xbf16>
    %cst_32 = arith.constant dense<0.000000e+00> : vector<256x16xf32>
    %26 = tpu.matmul %22, %25, %cst_32 {dimension_numbers = #tpu.dot_dimension_numbers<[1], [0], [0], [1], [0, 0, 1, 1], [], []>} : vector<256x48xbf16>, vector<48x16xbf16>, vector<256x16xf32> -> vector<256x16xf32>
    %27 = arith.addf %23, %26 : vector<256x16xf32>
    %c0_33 = arith.constant 0 : index
    %c0_34 = arith.constant 0 : index
    %28 = vector.load %arg7[%c0_33, %c0_34] : memref<256x16xf32, #tpu.memory_space<vmem>>, vector<256x16xf32>
    tpu.vector_store %arg7[%c0_33, %c0_34], %27 {strides = array<i32>} : memref<256x16xf32, #tpu.memory_space<vmem>>, vector<256x16xf32>,
    %c0_35 = arith.constant 0 : index
    %c0_36 = arith.constant 0 : index
    %29 = vector.load %arg7[%c0_35, %c0_36] : memref<256x16xf32, #tpu.memory_space<vmem>>, vector<256x16xf32>
    %c0_37 = arith.constant 0 : index
    %c0_38 = arith.constant 0 : index
    %30 = vector.load %arg3[%c0_37, %c0_38] : memref<1x16xf32, #tpu.memory_space<vmem>>, vector<1x16xf32>
    %31 = vector.broadcast %30 : vector<1x16xf32> to vector<256x16xf32>
    %32 = arith.addf %29, %31 : vector<256x16xf32>
    %cst_39 = arith.constant 0.000000e+00 : f32
    %33 = vector.broadcast %cst_39 : f32 to vector<256x16xf32>
    %34 = arith.maximumf %32, %33 : vector<256x16xf32>
    %35 = arith.truncf %34 : vector<256x16xf32> to vector<256x16xbf16>
    %c0_40 = arith.constant 0 : index
    %c0_41 = arith.constant 0 : index
    %36 = vector.load %arg4[%c0_40, %c0_41] : memref<16x20xbf16, #tpu.memory_space<vmem>>, vector<16x20xbf16>
    %cst_42 = arith.constant dense<0.000000e+00> : vector<256x20xf32>
    %37 = tpu.matmul %35, %36, %cst_42 {dimension_numbers = #tpu.dot_dimension_numbers<[1], [0], [0], [1], [0, 0, 1, 1], [], []>} : vector<256x16xbf16>, vector<16x20xbf16>, vector<256x20xf32> -> vector<256x20xf32>
    %c0_43 = arith.constant 0 : index
    %c0_44 = arith.constant 0 : index
    %38 = vector.load %arg5[%c0_43, %c0_44] : memref<1x20xf32, #tpu.memory_space<vmem>>, vector<1x20xf32>
    %39 = vector.broadcast %38 : vector<1x20xf32> to vector<256x20xf32>
    %40 = arith.addf %37, %39 : vector<256x20xf32>
    %41 = vector.shape_cast %40 : vector<256x20xf32> to vector<1x16x16x20xf32>
    %c0_45 = arith.constant 0 : index
    %c0_46 = arith.constant 0 : index
    %c0_47 = arith.constant 0 : index
    %c0_48 = arith.constant 0 : index
    %42 = vector.load %arg6[%c0_45, %c0_46, %c0_47, %c0_48] : memref<1x16x16x20xf32, #tpu.memory_space<vmem>>, vector<1x16x16x20xf32>
    tpu.vector_store %arg6[%c0_45, %c0_46, %c0_47, %c0_48], %41 {strides = array<i32>} : memref<1x16x16x20xf32, #tpu.memory_space<vmem>>, vector<1x16x16x20xf32>,
    return
  }
  func.func @transform_0(%arg0: i32) -> (i32, i32, i32, i32) {
    %c0_i32 = arith.constant 0 : i32
    %c0_i32_0 = arith.constant 0 : i32
    %c0_i32_1 = arith.constant 0 : i32
    %c0_i32_2 = arith.constant 0 : i32
    return %arg0, %c0_i32, %c0_i32_0, %c0_i32_1 : i32, i32, i32, i32
  }
  func.func @transform_1(%arg0: i32) -> (i32, i32, i32) {
    %c0_i32 = arith.constant 0 : i32
    %c0_i32_0 = arith.constant 0 : i32
    %c0_i32_1 = arith.constant 0 : i32
    %c0_i32_2 = arith.constant 0 : i32
    return %c0_i32, %c0_i32_0, %c0_i32_1 : i32, i32, i32
  }
  func.func @transform_2(%arg0: i32) -> (i32, i32) {
    %c0_i32 = arith.constant 0 : i32
    %c0_i32_0 = arith.constant 0 : i32
    %c0_i32_1 = arith.constant 0 : i32
    return %c0_i32, %c0_i32_0 : i32, i32
  }
  func.func @transform_3(%arg0: i32) -> (i32, i32) {
    %c0_i32 = arith.constant 0 : i32
    %c0_i32_0 = arith.constant 0 : i32
    %c0_i32_1 = arith.constant 0 : i32
    return %c0_i32, %c0_i32_0 : i32, i32
  }
  func.func @transform_4(%arg0: i32) -> (i32, i32) {
    %c0_i32 = arith.constant 0 : i32
    %c0_i32_0 = arith.constant 0 : i32
    %c0_i32_1 = arith.constant 0 : i32
    return %c0_i32, %c0_i32_0 : i32, i32
  }
  func.func @transform_5(%arg0: i32) -> (i32, i32, i32, i32) {
    %c0_i32 = arith.constant 0 : i32
    %c0_i32_0 = arith.constant 0 : i32
    %c0_i32_1 = arith.constant 0 : i32
    %c0_i32_2 = arith.constant 0 : i32
    return %arg0, %c0_i32, %c0_i32_0, %c0_i32_1 : i32, i32, i32, i32
  }
}

</mosaic_0001>

<llo_original>
// kernel: tpu_custom_call.1
$region0: #{tpu_custom_call.1}
  #allocation0 [shape = 'u32[]', space=smem, size = 0x4, offset = 0x4, fixed_abs, tag = 'smem constant byte address 0x4 - core index']
  #allocation1 [shape = 'u32[144,128]{1,0:T(1,128)}', space=vmem, size = 0x12000, scoped, tag = 'internal scratch']
  #allocation2 [shape = 'f32[256,16]{1,0:T(8,128)}', space=vmem, size = 0x20000, scoped, tag = 'scratch operand']
  %s0 = inlined_call_operand.hbm [shape: bf16[2,18,16,48], index: 0, kind: input, shape index: {}]
  %s1 = inlined_call_operand.vmem [shape: bf16[3,48,16], index: 1, kind: input, shape index: {}]
  %s2 = inlined_call_operand.vmem [shape: f32[1,16], index: 2, kind: input, shape index: {}]
  %s3 = inlined_call_operand.vmem [shape: bf16[16,20], index: 3, kind: input, shape index: {}]
  %s4 = inlined_call_operand.vmem [shape: f32[1,20], index: 4, kind: input, shape index: {}]
  %s5 = inlined_call_operand.hbm [shape: f32[2,16,16,20], index: 5, kind: output, shape index: {}]
  %s6 = sld [smem:[#allocation0]]
  $region57: #{tpu_custom_call.1} parent=0
    _
  %s8 = ssub.s32 1, %s6
  %s9 = scalar_select 0, %s8, %s6
  $region1: #{tpu_custom_call.1} parent=0
    #allocation3 [shape = 'u8[147456]{0}', space=vmem, size = 0x24000, scoped, tag = 'input window, operand 0']
    #allocation4 [shape = 's32[2]{0}', space=sflag, size = 0x8, scoped, tag = 'scoped memory for tpu_custom_call.1']
    #allocation5 [shape = 's32[2]{0}', space=sflag, size = 0x8, scoped, tag = 'scoped memory for tpu_custom_call.1']
    #allocation6 [shape = 'u8[262144]{0}', space=vmem, size = 0x40000, scoped, tag = 'output window, operand 0']
    %10 = vsyncpa [#allocation4], 0
    %s11 = scalar_lea.sflag [#allocation4], 1
    %12 = vsyncpa %s11, 0
    %13 = vsyncpa [#allocation5], 0
    %s14 = scalar_lea.sflag [#allocation5], 1
    %15 = vsyncpa %s14, 0
    loop: start=0, step=1, limit=4
    $region2: #{tpu_custom_call.1} parent=1 // loop_pre_header
      _
    $region3: #{tpu_custom_call.1} parent=1 // loop_header
      %s17 = sphi 0, %s21
      %p18 = scmp.ge.s32.totalorder %s17, 4
      %s27 = sphi 0, %s29
      %s30 = sphi 0, %s27
      %s31 = sphi 0, %s30
      %s47 = sphi 0, %s31
      %s51 = sphi 0, %s51
      %s53 = sphi 0, %s51
      %s54 = sphi 0, %s53
      %s68 = sphi 0, %s54
      %s72 = sphi 0, %s72
      %s74 = sphi 0, %s72
      %s75 = sphi 0, %s74
      %s89 = sphi 0, %s75
      %s93 = sphi 0, %s93
      %s95 = sphi 0, %s93
      %s96 = sphi 0, %s95
      %s110 = sphi 0, %s96
      %s114 = sphi 0, %s114
      %s116 = sphi 0, %s114
      %s117 = sphi 0, %s116
      %s131 = sphi 0, %s117
      %s137 = sphi 0, %s139
      %s140 = sphi 0, %s137
      %s141 = sphi 0, %s140
      %s157 = sphi 0, %s141
    $region4: #{tpu_custom_call.1} parent=1 // loop_header_branch
      %20 = sbr.rel (%p18) target = $region8
    $region5: #{tpu_custom_call.1} parent=1 // loop_body
      %s22 = ssub.s32 %s17, 1
      %s23 = ssub.s32 %s17, 2
      %s24 = sadd.s32 %s17, 1
      %s25 = ssub.s32 %s17, %s24
      %p26 = scmp.eq.s32.totalorder %s25, 0
      %s28 = sadd.s32 %s27, 1
      %s29 = scalar_select %p26, %s27, %s28
      %p32 = pneg %p26
      %p33 = scmp.eq.s32.totalorder %s17, 1
      %p34 = por %p32, %p33
      %p35 = scmp.ne.s32.totalorder %s27, %s30
      %p36 = scmp.eq.s32.totalorder %s17, 0
      %p37 = por %p35, %p36
      %p38 = scmp.ne.s32.totalorder %s27, %s30
      %p39 = scmp.eq.s32.totalorder %s22, 1
      %p40 = por %p38, %p39
      %p41 = scmp.ne.s32.totalorder %s30, %s31
      %p42 = scmp.eq.s32.totalorder %s22, 0
      %p43 = por %p41, %p42
      %p44 = scmp.ne.s32.totalorder %s30, %s31
      %p45 = scmp.eq.s32.totalorder %s23, 1
      %p46 = por %p44, %p45
      %p48 = scmp.ne.s32.totalorder %s31, %s47
      %p49 = scmp.eq.s32.totalorder %s23, 0
      %p50 = por %p48, %p49
      %s52 = sadd.s32 %s51, 1
      %p55 = scmp.eq.s32.totalorder %s17, 1
      %p56 = scmp.ne.s32.totalorder %s51, %s53
      %p57 = scmp.eq.s32.totalorder %s17, 0
      %p58 = por %p56, %p57
      %p59 = scmp.ne.s32.totalorder %s51, %s53
      %p60 = scmp.eq.s32.totalorder %s22, 1
      %p61 = por %p59, %p60
      %p62 = scmp.ne.s32.totalorder %s53, %s54
      %p63 = scmp.eq.s32.totalorder %s22, 0
      %p64 = por %p62, %p63
      %p65 = scmp.ne.s32.totalorder %s53, %s54
      %p66 = scmp.eq.s32.totalorder %s23, 1
      %p67 = por %p65, %p66
      %p69 = scmp.ne.s32.totalorder %s54, %s68
      %p70 = scmp.eq.s32.totalorder %s23, 0
      %p71 = por %p69, %p70
      %s73 = sadd.s32 %s72, 1
      %p76 = scmp.eq.s32.totalorder %s17, 1
      %p77 = scmp.ne.s32.totalorder %s72, %s74
      %p78 = scmp.eq.s32.totalorder %s17, 0
      %p79 = por %p77, %p78
      %p80 = scmp.ne.s32.totalorder %s72, %s74
      %p81 = scmp.eq.s32.totalorder %s22, 1
      %p82 = por %p80, %p81
      %p83 = scmp.ne.s32.totalorder %s74, %s75
      %p84 = scmp.eq.s32.totalorder %s22, 0
      %p85 = por %p83, %p84
      %p86 = scmp.ne.s32.totalorder %s74, %s75
      %p87 = scmp.eq.s32.totalorder %s23, 1
      %p88 = por %p86, %p87
      %p90 = scmp.ne.s32.totalorder %s75, %s89
      %p91 = scmp.eq.s32.totalorder %s23, 0
      %p92 = por %p90, %p91
      %s94 = sadd.s32 %s93, 1
      %p97 = scmp.eq.s32.totalorder %s17, 1
      %p98 = scmp.ne.s32.totalorder %s93, %s95
      %p99 = scmp.eq.s32.totalorder %s17, 0
      %p100 = por %p98, %p99
      %p101 = scmp.ne.s32.totalorder %s93, %s95
      %p102 = scmp.eq.s32.totalorder %s22, 1
      %p103 = por %p101, %p102
      %p104 = scmp.ne.s32.totalorder %s95, %s96
      %p105 = scmp.eq.s32.totalorder %s22, 0
      %p106 = por %p104, %p105
      %p107 = scmp.ne.s32.totalorder %s95, %s96
      %p108 = scmp.eq.s32.totalorder %s23, 1
      %p109 = por %p107, %p108
      %p111 = scmp.ne.s32.totalorder %s96, %s110
      %p112 = scmp.eq.s32.totalorder %s23, 0
      %p113 = por %p111, %p112
      %s115 = sadd.s32 %s114, 1
      %p118 = scmp.eq.s32.totalorder %s17, 1
      %p119 = scmp.ne.s32.totalorder %s114, %s116
      %p120 = scmp.eq.s32.totalorder %s17, 0
      %p121 = por %p119, %p120
      %p122 = scmp.ne.s32.totalorder %s114, %s116
      %p123 = scmp.eq.s32.totalorder %s22, 1
      %p124 = por %p122, %p123
      %p125 = scmp.ne.s32.totalorder %s116, %s117
      %p126 = scmp.eq.s32.totalorder %s22, 0
      %p127 = por %p125, %p126
      %p128 = scmp.ne.s32.totalorder %s116, %s117
      %p129 = scmp.eq.s32.totalorder %s23, 1
      %p130 = por %p128, %p129
      %p132 = scmp.ne.s32.totalorder %s117, %s131
      %p133 = scmp.eq.s32.totalorder %s23, 0
      %p134 = por %p132, %p133
      %s135 = ssub.s32 %s17, %s24
      %p136 = scmp.eq.s32.totalorder %s135, 0
      %s138 = sadd.s32 %s137, 1
      %s139 = scalar_select %p136, %s137, %s138
      %p142 = pneg %p136
      %p143 = scmp.eq.s32.totalorder %s17, 1
      %p144 = por %p142, %p143
      %p145 = scmp.ne.s32.totalorder %s137, %s140
      %p146 = scmp.eq.s32.totalorder %s17, 0
      %p147 = por %p145, %p146
      %p148 = scmp.ne.s32.totalorder %s137, %s140
      %p149 = scmp.eq.s32.totalorder %s22, 1
      %p150 = por %p148, %p149
      %p151 = scmp.ne.s32.totalorder %s140, %s141
      %p152 = scmp.eq.s32.totalorder %s22, 0
      %p153 = por %p151, %p152
      %p154 = scmp.ne.s32.totalorder %s140, %s141
      %p155 = scmp.eq.s32.totalorder %s23, 1
      %p156 = por %p154, %p155
      %p158 = scmp.ne.s32.totalorder %s141, %s157
      %p159 = scmp.eq.s32.totalorder %s23, 0
      %p160 = por %p158, %p159
      %p161 = scmp.le.s32.totalorder 1, %s17
      %p162 = scmp.lt.s32.totalorder %s17, 3
      %p163 = pnand %p161, %p162
      %p164 = pneg %p163
      // Predicated region
      $region9: #{tpu_custom_call.1} parent=5 // pred_check
        _
      $region10: #{tpu_custom_call.1} parent=5 // pred_check_branch
        %166 = sbr.rel (%p163) target = $region12
      $region11: #{tpu_custom_call.1} parent=5 // pred_region
        %s167 = ssub.s32 %s17, 1
        // Predicated region
        $region13: #{tpu_custom_call.1} parent=11 // pred_check
          %p168 = pneg %p64
        $region14: #{tpu_custom_call.1} parent=11 // pred_check_branch
          %170 = sbr.rel (%p168) target = $region16
        $region15: #{tpu_custom_call.1} parent=11 // pred_region
          _
        $region16: #{tpu_custom_call.1} parent=11 // pred_fallthru
          _
        // Predicated region
        $region17: #{tpu_custom_call.1} parent=11 // pred_check
          %p171 = pneg %p85
        $region18: #{tpu_custom_call.1} parent=11 // pred_check_branch
          %173 = sbr.rel (%p171) target = $region20
        $region19: #{tpu_custom_call.1} parent=11 // pred_region
          _
        $region20: #{tpu_custom_call.1} parent=11 // pred_fallthru
          _
        // Predicated region
        $region21: #{tpu_custom_call.1} parent=11 // pred_check
          %p174 = pneg %p106
        $region22: #{tpu_custom_call.1} parent=11 // pred_check_branch
          %176 = sbr.rel (%p174) target = $region24
        $region23: #{tpu_custom_call.1} parent=11 // pred_region
          _
        $region24: #{tpu_custom_call.1} parent=11 // pred_fallthru
          _
        // Predicated region
        $region25: #{tpu_custom_call.1} parent=11 // pred_check
          %p177 = pneg %p127
        $region26: #{tpu_custom_call.1} parent=11 // pred_check_branch
          %179 = sbr.rel (%p177) target = $region28
        $region27: #{tpu_custom_call.1} parent=11 // pred_region
          _
        $region28: #{tpu_custom_call.1} parent=11 // pred_fallthru
          _
      $region12: #{tpu_custom_call.1} parent=5 // pred_fallthru
        _
      %p180 = scmp.lt.s32.totalorder %s17, 2
      // Predicated region
      $region29: #{tpu_custom_call.1} parent=5 // pred_check
        %p181 = pneg %p180
      $region30: #{tpu_custom_call.1} parent=5 // pred_check_branch
        %183 = sbr.rel (%p181) target = $region32
      $region31: #{tpu_custom_call.1} parent=5 // pred_region
        // Predicated region
        $region33: #{tpu_custom_call.1} parent=31 // pred_check
          %p184 = pneg %p37
        $region34: #{tpu_custom_call.1} parent=31 // pred_check_branch
          %186 = sbr.rel (%p184) target = $region36
        $region35: #{tpu_custom_call.1} parent=31 // pred_region
          %s187 = sand.u32 %s27, 1
          %s188 = scalar_lea.sflag [#allocation4], %s187
          %s189 = sand.u32 %s27, 1
          %s190 = smul.addr %s189, 144
          %s191 = scalar_lea.vmem [#allocation3], %s190
          %s193 = ssub.s32 2304, 2304
          %194 = vsyncadd %s188, %s193
          %s195 = smul.addr %s17, 36
          %s196 = smul.addr %s195, 64
          %s197 = scalar_lea.hbm %s0, %s196
          %s198 = sshll.u32 %s191, 4
          %s199 = int_to_ptr.vmem [resolvable:$true] %s198
          %204 = dma.hbm_to_vmem [thread:$0]  %s197, 2304, %s199, %s188, 64, 64, 4
        $region36: #{tpu_custom_call.1} parent=31 // pred_fallthru
          _
      $region32: #{tpu_custom_call.1} parent=5 // pred_fallthru
        _
      %p205 = scmp.le.s32.totalorder 1, %s17
      %p206 = scmp.lt.s32.totalorder %s17, 3
      %p207 = pnand %p205, %p206
      %p208 = pneg %p207
      // Predicated region
      $region37: #{tpu_custom_call.1} parent=5 // pred_check
        _
      $region38: #{tpu_custom_call.1} parent=5 // pred_check_branch
        %210 = sbr.rel (%p207) target = $region40
      $region39: #{tpu_custom_call.1} parent=5 // pred_region
        %s211 = ssub.s32 %s17, 1
        %s212 = sand.u32 %s30, 1
        %s213 = scalar_lea.sflag [#allocation4], %s212
        %s214 = sand.u32 %s30, 1
        %s215 = smul.addr %s214, 144
        %s216 = scalar_lea.vmem [#allocation3], %s215
        // Predicated region
        $region41: #{tpu_custom_call.1} parent=39 // pred_check
          %p217 = pneg %p43
        $region42: #{tpu_custom_call.1} parent=39 // pred_check_branch
          %219 = sbr.rel (%p217) target = $region44
        $region43: #{tpu_custom_call.1} parent=39 // pred_region
          %220 = dma.done %s213, 2304
        $region44: #{tpu_custom_call.1} parent=39 // pred_fallthru
          _
        %s221 = sand.u32 %s30, 1
        %s222 = scalar_lea.sflag [#allocation4], %s221
        %s223 = sand.u32 %s30, 1
        %s224 = smul.addr %s223, 144
        %s225 = scalar_lea.vmem [#allocation3], %s224
        %p226 = pneg %p43
        %p227 = pneg %p40
        %p228 = pneg %p64
        %p229 = pneg %p61
        %p230 = pneg %p85
        %p231 = pneg %p82
        %p232 = pneg %p106
        %p233 = pneg %p103
        %p234 = pneg %p127
        %p235 = pneg %p124
        %p236 = pneg %p153
        %p237 = pneg %p150
        %s238 = sand.u32 %s140, 1
        %s239 = scalar_lea.sflag [#allocation5], %s238
        %s240 = sand.u32 %s140, 1
        %s241 = smul.addr %s240, 256
        %s242 = scalar_lea.vmem [#allocation6], %s241
        %vm244 = vcmask 130048
        %245 = vst.msk [vmem:[#allocation2] sm:$0xff] %vm244, 0.0
        %246 = vst.msk [vmem:[#allocation2 + $0x8] sm:$0xff] %vm244, 0.0
        %247 = vst.msk [vmem:[#allocation2 + $0x10] sm:$0xff] %vm244, 0.0
        %248 = vst.msk [vmem:[#allocation2 + $0x18] sm:$0xff] %vm244, 0.0
        %249 = vst.msk [vmem:[#allocation2 + $0x20] sm:$0xff] %vm244, 0.0
        %250 = vst.msk [vmem:[#allocation2 + $0x28] sm:$0xff] %vm244, 0.0
        %251 = vst.msk [vmem:[#allocation2 + $0x30] sm:$0xff] %vm244, 0.0
        %252 = vst.msk [vmem:[#allocation2 + $0x38] sm:$0xff] %vm244, 0.0
        %253 = vst.msk [vmem:[#allocation2 + $0x40] sm:$0xff] %vm244, 0.0
        %254 = vst.msk [vmem:[#allocation2 + $0x48] sm:$0xff] %vm244, 0.0
        %255 = vst.msk [vmem:[#allocation2 + $0x50] sm:$0xff] %vm244, 0.0
        %256 = vst.msk [vmem:[#allocation2 + $0x58] sm:$0xff] %vm244, 0.0
        %257 = vst.msk [vmem:[#allocation2 + $0x60] sm:$0xff] %vm244, 0.0
        %258 = vst.msk [vmem:[#allocation2 + $0x68] sm:$0xff] %vm244, 0.0
        %259 = vst.msk [vmem:[#allocation2 + $0x70] sm:$0xff] %vm244, 0.0
        %260 = vst.msk [vmem:[#allocation2 + $0x78] sm:$0xff] %vm244, 0.0
        %261 = vst.msk [vmem:[#allocation2 + $0x80] sm:$0xff] %vm244, 0.0
        %262 = vst.msk [vmem:[#allocation2 + $0x88] sm:$0xff] %vm244, 0.0
        %263 = vst.msk [vmem:[#allocation2 + $0x90] sm:$0xff] %vm244, 0.0
        %264 = vst.msk [vmem:[#allocation2 + $0x98] sm:$0xff] %vm244, 0.0
        %265 = vst.msk [vmem:[#allocation2 + $0xa0] sm:$0xff] %vm244, 0.0
        %266 = vst.msk [vmem:[#allocation2 + $0xa8] sm:$0xff] %vm244, 0.0
        %267 = vst.msk [vmem:[#allocation2 + $0xb0] sm:$0xff] %vm244, 0.0
        %268 = vst.msk [vmem:[#allocation2 + $0xb8] sm:$0xff] %vm244, 0.0
        %269 = vst.msk [vmem:[#allocation2 + $0xc0] sm:$0xff] %vm244, 0.0
        %270 = vst.msk [vmem:[#allocation2 + $0xc8] sm:$0xff] %vm244, 0.0
        %271 = vst.msk [vmem:[#allocation2 + $0xd0] sm:$0xff] %vm244, 0.0
        %272 = vst.msk [vmem:[#allocation2 + $0xd8] sm:$0xff] %vm244, 0.0
        %273 = vst.msk [vmem:[#allocation2 + $0xe0] sm:$0xff] %vm244, 0.0
        %274 = vst.msk [vmem:[#allocation2 + $0xe8] sm:$0xff] %vm244, 0.0
        %275 = vst.msk [vmem:[#allocation2 + $0xf0] sm:$0xff] %vm244, 0.0
        %276 = vst.msk [vmem:[#allocation2 + $0xf8] sm:$0xff] %vm244, 0.0
        %v277 = vld [vmem:[%s216] sm:$0xf]
        %v278 = vld [vmem:[%s216 + $0x4] sm:$0xf]
        %v279 = vld [vmem:[%s216 + $0x8] sm:$0xf]
        %v280 = vld [vmem:[%s216 + $0xc] sm:$0xf]
        %v281 = vld [vmem:[%s216 + $0x10] sm:$0xf]
        %v282 = vld [vmem:[%s216 + $0x14] sm:$0xf]
        %v283 = vld [vmem:[%s216 + $0x18] sm:$0xf]
        %v284 = vld [vmem:[%s216 + $0x1c] sm:$0xf]
        %v285 = vld [vmem:[%s216 + $0x20] sm:$0xf]
        %v286 = vld [vmem:[%s216 + $0x24] sm:$0xf]
        %v287 = vld [vmem:[%s216 + $0x28] sm:$0xf]
        %v288 = vld [vmem:[%s216 + $0x2c] sm:$0xf]
        %v289 = vld [vmem:[%s216 + $0x30] sm:$0xf]
        %v290 = vld [vmem:[%s216 + $0x34] sm:$0xf]
        %v291 = vld [vmem:[%s216 + $0x38] sm:$0xf]
        %v292 = vld [vmem:[%s216 + $0x3c] sm:$0xf]
        %v293 = vld [vmem:[%s216 + $0x40] sm:$0xf]
        %v294 = vld [vmem:[%s216 + $0x44] sm:$0xf]
        %v295 = vld [vmem:[%s216 + $0x48] sm:$0xf]
        %v296 = vld [vmem:[%s216 + $0x4c] sm:$0xf]
        %v297 = vld [vmem:[%s216 + $0x50] sm:$0xf]
        %v298 = vld [vmem:[%s216 + $0x54] sm:$0xf]
        %v299 = vld [vmem:[%s216 + $0x58] sm:$0xf]
        %v300 = vld [vmem:[%s216 + $0x5c] sm:$0xf]
        %v301 = vld [vmem:[%s216 + $0x60] sm:$0xf]
        %v302 = vld [vmem:[%s216 + $0x64] sm:$0xf]
        %v303 = vld [vmem:[%s216 + $0x68] sm:$0xf]
        %v304 = vld [vmem:[%s216 + $0x6c] sm:$0xf]
        %v305 = vld [vmem:[%s216 + $0x70] sm:$0xf]
        %v306 = vld [vmem:[%s216 + $0x74] sm:$0xf]
        %v307 = vld [vmem:[%s216 + $0x78] sm:$0xf]
        %v308 = vld [vmem:[%s216 + $0x7c] sm:$0xf]
        %v309 = vld [vmem:[#allocation2] sm:$0xff]
        %v310 = vld [vmem:[#allocation2 + $0x8] sm:$0xff]
        %v311 = vld [vmem:[#allocation2 + $0x10] sm:$0xff]
        %v312 = vld [vmem:[#allocation2 + $0x18] sm:$0xff]
        %v313 = vld [vmem:[#allocation2 + $0x20] sm:$0xff]
        %v314 = vld [vmem:[#allocation2 + $0x28] sm:$0xff]
        %v315 = vld [vmem:[#allocation2 + $0x30] sm:$0xff]
        %v316 = vld [vmem:[#allocation2 + $0x38] sm:$0xff]
        %v317 = vld [vmem:[#allocation2 + $0x40] sm:$0xff]
        %v318 = vld [vmem:[#allocation2 + $0x48] sm:$0xff]
        %v319 = vld [vmem:[#allocation2 + $0x50] sm:$0xff]
        %v320 = vld [vmem:[#allocation2 + $0x58] sm:$0xff]
        %v321 = vld [vmem:[#allocation2 + $0x60] sm:$0xff]
        %v322 = vld [vmem:[#allocation2 + $0x68] sm:$0xff]
        %v323 = vld [vmem:[#allocation2 + $0x70] sm:$0xff]
        %v324 = vld [vmem:[#allocation2 + $0x78] sm:$0xff]
        %v325 = vld [vmem:[#allocation2 + $0x80] sm:$0xff]
        %v326 = vld [vmem:[#allocation2 + $0x88] sm:$0xff]
        %v327 = vld [vmem:[#allocation2 + $0x90] sm:$0xff]
        %v328 = vld [vmem:[#allocation2 + $0x98] sm:$0xff]
        %v329 = vld [vmem:[#allocation2 + $0xa0] sm:$0xff]
        %v330 = vld [vmem:[#allocation2 + $0xa8] sm:$0xff]
        %v331 = vld [vmem:[#allocation2 + $0xb0] sm:$0xff]
        %v332 = vld [vmem:[#allocation2 + $0xb8] sm:$0xff]
        %v333 = vld [vmem:[#allocation2 + $0xc0] sm:$0xff]
        %v334 = vld [vmem:[#allocation2 + $0xc8] sm:$0xff]
        %v335 = vld [vmem:[#allocation2 + $0xd0] sm:$0xff]
        %v336 = vld [vmem:[#allocation2 + $0xd8] sm:$0xff]
        %v337 = vld [vmem:[#allocation2 + $0xe0] sm:$0xff]
        %v338 = vld [vmem:[#allocation2 + $0xe8] sm:$0xff]
        %v339 = vld [vmem:[#allocation2 + $0xf0] sm:$0xff]
        %v340 = vld [vmem:[#allocation2 + $0xf8] sm:$0xff]
        %v341 = vld [vmem:[%s1] sm:$0xf]
        %v342 = vld [vmem:[%s1 + $0x4] sm:$0xf]
        %v343 = vld [vmem:[%s1 + $0x8] sm:$0xf]
        %v344 = vld [vmem:[%s1 + $0xc] sm:$0xf]
        %v345 = vld [vmem:[%s1 + $0x10] sm:$0xf]
        %v346 = vld [vmem:[%s1 + $0x14] sm:$0xf]
        %v379 = vunpack.c.l.b16 %v277
        %v380 = vunpack.c.l.b16 %v278
        %v381 = vunpack.c.l.b16 %v279
        %v382 = vunpack.c.l.b16 %v280
        %v383 = vunpack.c.l.b16 %v281
        %v384 = vunpack.c.l.b16 %v282
        %v385 = vunpack.c.l.b16 %v283
        %v386 = vunpack.c.l.b16 %v284
        %v387 = vunpack.c.l.b16 %v285
        %v388 = vunpack.c.l.b16 %v286
        %v389 = vunpack.c.l.b16 %v287
        %v390 = vunpack.c.l.b16 %v288
        %v391 = vunpack.c.l.b16 %v289
        %v392 = vunpack.c.l.b16 %v290
        %v393 = vunpack.c.l.b16 %v291
        %v394 = vunpack.c.l.b16 %v292
        %v395 = vunpack.c.l.b16 %v293
        %v396 = vunpack.c.l.b16 %v294
        %v397 = vunpack.c.l.b16 %v295
        %v398 = vunpack.c.l.b16 %v296
        %v399 = vunpack.c.l.b16 %v297
        %v400 = vunpack.c.l.b16 %v298
        %v401 = vunpack.c.l.b16 %v299
        %v402 = vunpack.c.l.b16 %v300
        %v403 = vunpack.c.l.b16 %v301
        %v404 = vunpack.c.l.b16 %v302
        %v405 = vunpack.c.l.b16 %v303
        %v406 = vunpack.c.l.b16 %v304
        %v407 = vunpack.c.l.b16 %v305
        %v408 = vunpack.c.l.b16 %v306
        %v409 = vunpack.c.l.b16 %v307
        %v410 = vunpack.c.l.b16 %v308
        %v411 = vpack.c.b16 %v380, %v379
        %v412 = vpack.c.b16 %v382, %v381
        %v413 = vpack.c.b16 %v384, %v383
        %v414 = vpack.c.b16 %v386, %v385
        %v415 = vpack.c.b16 %v388, %v387
        %v416 = vpack.c.b16 %v390, %v389
        %v417 = vpack.c.b16 %v392, %v391
        %v418 = vpack.c.b16 %v394, %v393
        %v419 = vpack.c.b16 %v396, %v395
        %v420 = vpack.c.b16 %v398, %v397
        %v421 = vpack.c.b16 %v400, %v399
        %v422 = vpack.c.b16 %v402, %v401
        %v423 = vpack.c.b16 %v404, %v403
        %v424 = vpack.c.b16 %v406, %v405
        %v425 = vpack.c.b16 %v408, %v407
        %v426 = vpack.c.b16 %v410, %v409
        %v433 = vunpack.c.l.b16 %v341
        %v434 = vunpack.c.l.b16 %v342
        %v435 = vunpack.c.l.b16 %v343
        %v436 = vunpack.c.l.b16 %v344
        %v437 = vunpack.c.l.b16 %v345
        %v438 = vunpack.c.l.b16 %v346
        %v439 = vpack.c.b16 %v434, %v433
        %v440 = vpack.c.b16 %v436, %v435
        %v441 = vpack.c.b16 %v438, %v437
        %vm445 = vcmask 392192
        %v447 = vsel %vm445, %v411, 0
        %v450 = vsel %vm445, %v412, 0
        %v453 = vsel %vm445, %v413, 0
        %v456 = vsel %vm445, %v414, 0
        %v459 = vsel %vm445, %v415, 0
        %v462 = vsel %vm445, %v416, 0
        %v465 = vsel %vm445, %v417, 0
        %v468 = vsel %vm445, %v418, 0
        %v471 = vsel %vm445, %v419, 0
        %v474 = vsel %vm445, %v420, 0
        %v477 = vsel %vm445, %v421, 0
        %v480 = vsel %vm445, %v422, 0
        %v483 = vsel %vm445, %v423, 0
        %v486 = vsel %vm445, %v424, 0
        %v489 = vsel %vm445, %v425, 0
        %v492 = vsel %vm445, %v426, 0
        %494 = vmatprep.subr.bf16.mxu0 0
        %495 = vmatpush1.bf16.msra.mxu0 %v439
        %496 = vmatprep.subr.bf16.mxu0 0
        %497 = vmatpush1.bf16.msra.mxu0 %v440
        %498 = vmatprep.subr.bf16.mxu0 0
        %499 = vmatpush1.bf16.msra.mxu0 %v441
        %500 = vmatprep.subr.bf16.mxu0 0
        %501 = vmatpush1.bf16.msra.mxu0 0
        %502 = vmatprep.subr.bf16.mxu0 0
        %503 = vmatpush1.bf16.msra.mxu0 0
        %504 = vmatprep.subr.bf16.mxu0 0
        %505 = vmatpush1.bf16.msra.mxu0 0
        %506 = vmatprep.subr.bf16.mxu0 0
        %507 = vmatpush1.bf16.msra.mxu0 0
        %508 = vmatprep.subr.bf16.mxu0 0
        %509 = vmatpush1.bf16.msra.mxu0 0
        %510 = vmatprep.subr.bf16.mxu0 0
        %511 = vmatpush1.bf16.msra.mxu0 0
        %512 = vmatprep.subr.bf16.mxu0 0
        %513 = vmatpush1.bf16.msra.mxu0 0
        %514 = vmatprep.subr.bf16.mxu0 0
        %515 = vmatpush1.bf16.msra.mxu0 0
        %516 = vmatprep.subr.bf16.mxu0 0
        %517 = vmatpush1.bf16.msra.mxu0 0
        %518 = vmatprep.subr.bf16.mxu0 0
        %519 = vmatpush1.bf16.msra.mxu0 0
        %520 = vmatprep.subr.bf16.mxu0 0
        %521 = vmatpush1.bf16.msra.mxu0 0
        %522 = vmatprep.subr.bf16.mxu0 0
        %523 = vmatpush1.bf16.msra.mxu0 0
        %524 = vmatprep.subr.bf16.mxu0 0
        %525 = vmatpush1.bf16.msra.mxu0 0
        %526 = vmatprep.mubr.bf16.mxu0 0
        %527 = vmatmul.mubr.bf16.gmra.mrb[0].mxu0 %v447
        %v528 = vpop.f32.mrb[0].mxu0
        %v529 = vadd.f32 0.0, %v528
        %v530 = vpop.f32.mrb[0].mxu0
        %v531 = vpop.f32.mrb[0].mxu0
        %v532 = vadd.f32 0.0, %v531
        %v533 = vpop.f32.mrb[0].mxu0
        %534 = vmatprep.mubr.bf16.mxu0 0
        %535 = vmatmul.mubr.bf16.gmra.mrb[0].mxu0 %v450
        %v536 = vpop.f32.mrb[0].mxu0
        %v537 = vadd.f32 0.0, %v536
        %v538 = vpop.f32.mrb[0].mxu0
        %v539 = vpop.f32.mrb[0].mxu0
        %v540 = vadd.f32 0.0, %v539
        %v541 = vpop.f32.mrb[0].mxu0
        %542 = vmatprep.mubr.bf16.mxu0 0
        %543 = vmatmul.mubr.bf16.gmra.mrb[0].mxu0 %v453
        %v544 = vpop.f32.mrb[0].mxu0
        %v545 = vadd.f32 0.0, %v544
        %v546 = vpop.f32.mrb[0].mxu0
        %v547 = vpop.f32.mrb[0].mxu0
        %v548 = vadd.f32 0.0, %v547
        %v549 = vpop.f32.mrb[0].mxu0
        %550 = vmatprep.mubr.bf16.mxu0 0
        %551 = vmatmul.mubr.bf16.gmra.mrb[0].mxu0 %v456
        %v552 = vpop.f32.mrb[0].mxu0
        %v553 = vadd.f32 0.0, %v552
        %v554 = vpop.f32.mrb[0].mxu0
        %v555 = vpop.f32.mrb[0].mxu0
        %v556 = vadd.f32 0.0, %v555
        %v557 = vpop.f32.mrb[0].mxu0
        %558 = vmatprep.mubr.bf16.mxu0 0
        %559 = vmatmul.mubr.bf16.gmra.mrb[0].mxu0 %v459
        %v560 = vpop.f32.mrb[0].mxu0
        %v561 = vadd.f32 0.0, %v560
        %v562 = vpop.f32.mrb[0].mxu0
        %v563 = vpop.f32.mrb[0].mxu0
        %v564 = vadd.f32 0.0, %v563
        %v565 = vpop.f32.mrb[0].mxu0
        %566 = vmatprep.mubr.bf16.mxu0 0
        %567 = vmatmul.mubr.bf16.gmra.mrb[0].mxu0 %v462
        %v568 = vpop.f32.mrb[0].mxu0
        %v569 = vadd.f32 0.0, %v568
        %v570 = vpop.f32.mrb[0].mxu0
        %v571 = vpop.f32.mrb[0].mxu0
        %v572 = vadd.f32 0.0, %v571
        %v573 = vpop.f32.mrb[0].mxu0
        %574 = vmatprep.mubr.bf16.mxu0 0
        %575 = vmatmul.mubr.bf16.gmra.mrb[0].mxu0 %v465
        %v576 = vpop.f32.mrb[0].mxu0
        %v577 = vadd.f32 0.0, %v576
        %v578 = vpop.f32.mrb[0].mxu0
        %v579 = vpop.f32.mrb[0].mxu0
        %v580 = vadd.f32 0.0, %v579
        %v581 = vpop.f32.mrb[0].mxu0
        %582 = vmatprep.mubr.bf16.mxu0 0
        %583 = vmatmul.mubr.bf16.gmra.mrb[0].mxu0 %v468
        %v584 = vpop.f32.mrb[0].mxu0
        %v585 = vadd.f32 0.0, %v584
        %v586 = vpop.f32.mrb[0].mxu0
        %v587 = vpop.f32.mrb[0].mxu0
        %v588 = vadd.f32 0.0, %v587
        %v589 = vpop.f32.mrb[0].mxu0
        %590 = vmatprep.mubr.bf16.mxu0 0
        %591 = vmatmul.mubr.bf16.gmra.mrb[0].mxu0 %v471
        %v592 = vpop.f32.mrb[0].mxu0
        %v593 = vadd.f32 0.0, %v592
        %v594 = vpop.f32.mrb[0].mxu0
        %v595 = vpop.f32.mrb[0].mxu0
        %v596 = vadd.f32 0.0, %v595
        %v597 = vpop.f32.mrb[0].mxu0
        %598 = vmatprep.mubr.bf16.mxu0 0
        %599 = vmatmul.mubr.bf16.gmra.mrb[0].mxu0 %v474
        %v600 = vpop.f32.mrb[0].mxu0
        %v601 = vadd.f32 0.0, %v600
        %v602 = vpop.f32.mrb[0].mxu0
        %v603 = vpop.f32.mrb[0].mxu0
        %v604 = vadd.f32 0.0, %v603
        %v605 = vpop.f32.mrb[0].mxu0
        %606 = vmatprep.mubr.bf16.mxu0 0
        %607 = vmatmul.mubr.bf16.gmra.mrb[0].mxu0 %v477
        %v608 = vpop.f32.mrb[0].mxu0
        %v609 = vadd.f32 0.0, %v608
        %v610 = vpop.f32.mrb[0].mxu0
        %v611 = vpop.f32.mrb[0].mxu0
        %v612 = vadd.f32 0.0, %v611
        %v613 = vpop.f32.mrb[0].mxu0
        %614 = vmatprep.mubr.bf16.mxu0 0
        %615 = vmatmul.mubr.bf16.gmra.mrb[0].mxu0 %v480
        %v616 = vpop.f32.mrb[0].mxu0
        %v617 = vadd.f32 0.0, %v616
        %v618 = vpop.f32.mrb[0].mxu0
        %v619 = vpop.f32.mrb[0].mxu0
        %v620 = vadd.f32 0.0, %v619
        %v621 = vpop.f32.mrb[0].mxu0
        %622 = vmatprep.mubr.bf16.mxu0 0
        %623 = vmatmul.mubr.bf16.gmra.mrb[0].mxu0 %v483
        %v624 = vpop.f32.mrb[0].mxu0
        %v625 = vadd.f32 0.0, %v624
        %v626 = vpop.f32.mrb[0].mxu0
        %v627 = vpop.f32.mrb[0].mxu0
        %v628 = vadd.f32 0.0, %v627
        %v629 = vpop.f32.mrb[0].mxu0
        %630 = vmatprep.mubr.bf16.mxu0 0
        %631 = vmatmul.mubr.bf16.gmra.mrb[0].mxu0 %v486
        %v632 = vpop.f32.mrb[0].mxu0
        %v633 = vadd.f32 0.0, %v632
        %v634 = vpop.f32.mrb[0].mxu0
        %v635 = vpop.f32.mrb[0].mxu0
        %v636 = vadd.f32 0.0, %v635
        %v637 = vpop.f32.mrb[0].mxu0
        %638 = vmatprep.mubr.bf16.mxu0 0
        %639 = vmatmul.mubr.bf16.gmra.mrb[0].mxu0 %v489
        %v640 = vpop.f32.mrb[0].mxu0
        %v641 = vadd.f32 0.0, %v640
        %v642 = vpop.f32.mrb[0].mxu0
        %v643 = vpop.f32.mrb[0].mxu0
        %v644 = vadd.f32 0.0, %v643
        %v645 = vpop.f32.mrb[0].mxu0
        %646 = vmatprep.mubr.bf16.mxu0 0
        %647 = vmatmul.mubr.bf16.gmra.mrb[0].mxu0 %v492
        %v648 = vpop.f32.mrb[0].mxu0
        %v649 = vadd.f32 0.0, %v648
        %v650 = vpop.f32.mrb[0].mxu0
        %v651 = vpop.f32.mrb[0].mxu0
        %v652 = vadd.f32 0.0, %v651
        %v653 = vpop.f32.mrb[0].mxu0
        %654 = vdwg.mxu0
        %v655 = vadd.f32 %v309, %v529
        %v656 = vadd.f32 %v310, %v532
        %v657 = vadd.f32 %v311, %v537
        %v658 = vadd.f32 %v312, %v540
        %v659 = vadd.f32 %v313, %v545
        %v660 = vadd.f32 %v314, %v548
        %v661 = vadd.f32 %v315, %v553
        %v662 = vadd.f32 %v316, %v556
        %v663 = vadd.f32 %v317, %v561
        %v664 = vadd.f32 %v318, %v564
        %v665 = vadd.f32 %v319, %v569
        %v666 = vadd.f32 %v320, %v572
        %v667 = vadd.f32 %v321, %v577
        %v668 = vadd.f32 %v322, %v580
        %v669 = vadd.f32 %v323, %v585
        %v670 = vadd.f32 %v324, %v588
        %v671 = vadd.f32 %v325, %v593
        %v672 = vadd.f32 %v326, %v596
        %v673 = vadd.f32 %v327, %v601
        %v674 = vadd.f32 %v328, %v604
        %v675 = vadd.f32 %v329, %v609
        %v676 = vadd.f32 %v330, %v612
        %v677 = vadd.f32 %v331, %v617
        %v678 = vadd.f32 %v332, %v620
        %v679 = vadd.f32 %v333, %v625
        %v680 = vadd.f32 %v334, %v628
        %v681 = vadd.f32 %v335, %v633
        %v682 = vadd.f32 %v336, %v636
        %v683 = vadd.f32 %v337, %v641
        %v684 = vadd.f32 %v338, %v644
        %v685 = vadd.f32 %v339, %v649
        %v686 = vadd.f32 %v340, %v652
        %687 = vst.msk [vmem:[#allocation2] sm:$0xff] %vm244, %v655
        %688 = vst.msk [vmem:[#allocation2 + $0x8] sm:$0xff] %vm244, %v656
        %689 = vst.msk [vmem:[#allocation2 + $0x10] sm:$0xff] %vm244, %v657
        %690 = vst.msk [vmem:[#allocation2 + $0x18] sm:$0xff] %vm244, %v658
        %691 = vst.msk [vmem:[#allocation2 + $0x20] sm:$0xff] %vm244, %v659
        %692 = vst.msk [vmem:[#allocation2 + $0x28] sm:$0xff] %vm244, %v660
        %693 = vst.msk [vmem:[#allocation2 + $0x30] sm:$0xff] %vm244, %v661
        %694 = vst.msk [vmem:[#allocation2 + $0x38] sm:$0xff] %vm244, %v662
        %695 = vst.msk [vmem:[#allocation2 + $0x40] sm:$0xff] %vm244, %v663
        %696 = vst.msk [vmem:[#allocation2 + $0x48] sm:$0xff] %vm244, %v664
        %697 = vst.msk [vmem:[#allocation2 + $0x50] sm:$0xff] %vm244, %v665
        %698 = vst.msk [vmem:[#allocation2 + $0x58] sm:$0xff] %vm244, %v666
        %699 = vst.msk [vmem:[#allocation2 + $0x60] sm:$0xff] %vm244, %v667
        %700 = vst.msk [vmem:[#allocation2 + $0x68] sm:$0xff] %vm244, %v668
        %701 = vst.msk [vmem:[#allocation2 + $0x70] sm:$0xff] %vm244, %v669
        %702 = vst.msk [vmem:[#allocation2 + $0x78] sm:$0xff] %vm244, %v670
        %703 = vst.msk [vmem:[#allocation2 + $0x80] sm:$0xff] %vm244, %v671
        %704 = vst.msk [vmem:[#allocation2 + $0x88] sm:$0xff] %vm244, %v672
        %705 = vst.msk [vmem:[#allocation2 + $0x90] sm:$0xff] %vm244, %v673
        %706 = vst.msk [vmem:[#allocation2 + $0x98] sm:$0xff] %vm244, %v674
        %707 = vst.msk [vmem:[#allocation2 + $0xa0] sm:$0xff] %vm244, %v675
        %708 = vst.msk [vmem:[#allocation2 + $0xa8] sm:$0xff] %vm244, %v676
        %709 = vst.msk [vmem:[#allocation2 + $0xb0] sm:$0xff] %vm244, %v677
        %710 = vst.msk [vmem:[#allocation2 + $0xb8] sm:$0xff] %vm244, %v678
        %711 = vst.msk [vmem:[#allocation2 + $0xc0] sm:$0xff] %vm244, %v679
        %712 = vst.msk [vmem:[#allocation2 + $0xc8] sm:$0xff] %vm244, %v680
        %713 = vst.msk [vmem:[#allocation2 + $0xd0] sm:$0xff] %vm244, %v681
        %714 = vst.msk [vmem:[#allocation2 + $0xd8] sm:$0xff] %vm244, %v682
        %715 = vst.msk [vmem:[#allocation2 + $0xe0] sm:$0xff] %vm244, %v683
        %716 = vst.msk [vmem:[#allocation2 + $0xe8] sm:$0xff] %vm244, %v684
        %717 = vst.msk [vmem:[#allocation2 + $0xf0] sm:$0xff] %vm244, %v685
        %718 = vst.msk [vmem:[#allocation2 + $0xf8] sm:$0xff] %vm244, %v686
        %s719 = scalar_lea.vmem %s216, 8 [#allocation3]
        %v720 = vld [vmem:[%s719] sm:$0xf]
        %v721 = vld [vmem:[%s719 + $0x4] sm:$0xf]
        %v722 = vld [vmem:[%s719 + $0x8] sm:$0xf]
        %v723 = vld [vmem:[%s719 + $0xc] sm:$0xf]
        %v724 = vld [vmem:[%s719 + $0x10] sm:$0xf]
        %v725 = vld [vmem:[%s719 + $0x14] sm:$0xf]
        %v726 = vld [vmem:[%s719 + $0x18] sm:$0xf]
        %v727 = vld [vmem:[%s719 + $0x1c] sm:$0xf]
        %v728 = vld [vmem:[%s719 + $0x20] sm:$0xf]
        %v729 = vld [vmem:[%s719 + $0x24] sm:$0xf]
        %v730 = vld [vmem:[%s719 + $0x28] sm:$0xf]
        %v731 = vld [vmem:[%s719 + $0x2c] sm:$0xf]
        %v732 = vld [vmem:[%s719 + $0x30] sm:$0xf]
        %v733 = vld [vmem:[%s719 + $0x34] sm:$0xf]
        %v734 = vld [vmem:[%s719 + $0x38] sm:$0xf]
        %v735 = vld [vmem:[%s719 + $0x3c] sm:$0xf]
        %v736 = vld [vmem:[%s719 + $0x40] sm:$0xf]
        %v737 = vld [vmem:[%s719 + $0x44] sm:$0xf]
        %v738 = vld [vmem:[%s719 + $0x48] sm:$0xf]
        %v739 = vld [vmem:[%s719 + $0x4c] sm:$0xf]
        %v740 = vld [vmem:[%s719 + $0x50] sm:$0xf]
        %v741 = vld [vmem:[%s719 + $0x54] sm:$0xf]
        %v742 = vld [vmem:[%s719 + $0x58] sm:$0xf]
        %v743 = vld [vmem:[%s719 + $0x5c] sm:$0xf]
        %v744 = vld [vmem:[%s719 + $0x60] sm:$0xf]
        %v745 = vld [vmem:[%s719 + $0x64] sm:$0xf]
        %v746 = vld [vmem:[%s719 + $0x68] sm:$0xf]
        %v747 = vld [vmem:[%s719 + $0x6c] sm:$0xf]
        %v748 = vld [vmem:[%s719 + $0x70] sm:$0xf]
        %v749 = vld [vmem:[%s719 + $0x74] sm:$0xf]
        %v750 = vld [vmem:[%s719 + $0x78] sm:$0xf]
        %v751 = vld [vmem:[%s719 + $0x7c] sm:$0xf]
        %v752 = vld [vmem:[#allocation2] sm:$0xff]
        %v753 = vld [vmem:[#allocation2 + $0x8] sm:$0xff]
        %v754 = vld [vmem:[#allocation2 + $0x10] sm:$0xff]
        %v755 = vld [vmem:[#allocation2 + $0x18] sm:$0xff]
        %v756 = vld [vmem:[#allocation2 + $0x20] sm:$0xff]
        %v757 = vld [vmem:[#allocation2 + $0x28] sm:$0xff]
        %v758 = vld [vmem:[#allocation2 + $0x30] sm:$0xff]
        %v759 = vld [vmem:[#allocation2 + $0x38] sm:$0xff]
        %v760 = vld [vmem:[#allocation2 + $0x40] sm:$0xff]
        %v761 = vld [vmem:[#allocation2 + $0x48] sm:$0xff]
        %v762 = vld [vmem:[#allocation2 + $0x50] sm:$0xff]
        %v763 = vld [vmem:[#allocation2 + $0x58] sm:$0xff]
        %v764 = vld [vmem:[#allocation2 + $0x60] sm:$0xff]
        %v765 = vld [vmem:[#allocation2 + $0x68] sm:$0xff]
        %v766 = vld [vmem:[#allocation2 + $0x70] sm:$0xff]
        %v767 = vld [vmem:[#allocation2 + $0x78] sm:$0xff]
        %v768 = vld [vmem:[#allocation2 + $0x80] sm:$0xff]
        %v769 = vld [vmem:[#allocation2 + $0x88] sm:$0xff]
        %v770 = vld [vmem:[#allocation2 + $0x90] sm:$0xff]
        %v771 = vld [vmem:[#allocation2 + $0x98] sm:$0xff]
        %v772 = vld [vmem:[#allocation2 + $0xa0] sm:$0xff]
        %v773 = vld [vmem:[#allocation2 + $0xa8] sm:$0xff]
        %v774 = vld [vmem:[#allocation2 + $0xb0] sm:$0xff]
        %v775 = vld [vmem:[#allocation2 + $0xb8] sm:$0xff]
        %v776 = vld [vmem:[#allocation2 + $0xc0] sm:$0xff]
        %v777 = vld [vmem:[#allocation2 + $0xc8] sm:$0xff]
        %v778 = vld [vmem:[#allocation2 + $0xd0] sm:$0xff]
        %v779 = vld [vmem:[#allocation2 + $0xd8] sm:$0xff]
        %v780 = vld [vmem:[#allocation2 + $0xe0] sm:$0xff]
        %v781 = vld [vmem:[#allocation2 + $0xe8] sm:$0xff]
        %v782 = vld [vmem:[#allocation2 + $0xf0] sm:$0xff]
        %v783 = vld [vmem:[#allocation2 + $0xf8] sm:$0xff]
        %s784 = scalar_lea.vmem %s1, 24
        %v785 = vld [vmem:[%s784] sm:$0xf]
        %v786 = vld [vmem:[%s784 + $0x4] sm:$0xf]
        %v787 = vld [vmem:[%s784 + $0x8] sm:$0xf]
        %v788 = vld [vmem:[%s784 + $0xc] sm:$0xf]
        %v789 = vld [vmem:[%s784 + $0x10] sm:$0xf]
        %v790 = vld [vmem:[%s784 + $0x14] sm:$0xf]
        %v823 = vunpack.c.l.b16 %v720
        %v824 = vunpack.c.l.b16 %v721
        %v825 = vunpack.c.l.b16 %v722
        %v826 = vunpack.c.l.b16 %v723
        %v827 = vunpack.c.l.b16 %v724
        %v828 = vunpack.c.l.b16 %v725
        %v829 = vunpack.c.l.b16 %v726
        %v830 = vunpack.c.l.b16 %v727
        %v831 = vunpack.c.l.b16 %v728
        %v832 = vunpack.c.l.b16 %v729
        %v833 = vunpack.c.l.b16 %v730
        %v834 = vunpack.c.l.b16 %v731
        %v835 = vunpack.c.l.b16 %v732
        %v836 = vunpack.c.l.b16 %v733
        %v837 = vunpack.c.l.b16 %v734
        %v838 = vunpack.c.l.b16 %v735
        %v839 = vunpack.c.l.b16 %v736
        %v840 = vunpack.c.l.b16 %v737
        %v841 = vunpack.c.l.b16 %v738
        %v842 = vunpack.c.l.b16 %v739
        %v843 = vunpack.c.l.b16 %v740
        %v844 = vunpack.c.l.b16 %v741
        %v845 = vunpack.c.l.b16 %v742
        %v846 = vunpack.c.l.b16 %v743
        %v847 = vunpack.c.l.b16 %v744
        %v848 = vunpack.c.l.b16 %v745
        %v849 = vunpack.c.l.b16 %v746
        %v850 = vunpack.c.l.b16 %v747
        %v851 = vunpack.c.l.b16 %v748
        %v852 = vunpack.c.l.b16 %v749
        %v853 = vunpack.c.l.b16 %v750
        %v854 = vunpack.c.l.b16 %v751
        %v855 = vpack.c.b16 %v824, %v823
        %v856 = vpack.c.b16 %v826, %v825
        %v857 = vpack.c.b16 %v828, %v827
        %v858 = vpack.c.b16 %v830, %v829
        %v859 = vpack.c.b16 %v832, %v831
        %v860 = vpack.c.b16 %v834, %v833
        %v861 = vpack.c.b16 %v836, %v835
        %v862 = vpack.c.b16 %v838, %v837
        %v863 = vpack.c.b16 %v840, %v839
        %v864 = vpack.c.b16 %v842, %v841
        %v865 = vpack.c.b16 %v844, %v843
        %v866 = vpack.c.b16 %v846, %v845
        %v867 = vpack.c.b16 %v848, %v847
        %v868 = vpack.c.b16 %v850, %v849
        %v869 = vpack.c.b16 %v852, %v851
        %v870 = vpack.c.b16 %v854, %v853
        %v877 = vunpack.c.l.b16 %v785
        %v878 = vunpack.c.l.b16 %v786
        %v879 = vunpack.c.l.b16 %v787
        %v880 = vunpack.c.l.b16 %v788
        %v881 = vunpack.c.l.b16 %v789
        %v882 = vunpack.c.l.b16 %v790
        %v883 = vpack.c.b16 %v878, %v877
        %v884 = vpack.c.b16 %v880, %v879
        %v885 = vpack.c.b16 %v882, %v881
        %v890 = vsel %vm445, %v855, 0
        %v893 = vsel %vm445, %v856, 0
        %v896 = vsel %vm445, %v857, 0
        %v899 = vsel %vm445, %v858, 0
        %v902 = vsel %vm445, %v859, 0
        %v905 = vsel %vm445, %v860, 0
        %v908 = vsel %vm445, %v861, 0
        %v911 = vsel %vm445, %v862, 0
        %v914 = vsel %vm445, %v863, 0
        %v917 = vsel %vm445, %v864, 0
        %v920 = vsel %vm445, %v865, 0
        %v923 = vsel %vm445, %v866, 0
        %v926 = vsel %vm445, %v867, 0
        %v929 = vsel %vm445, %v868, 0
        %v932 = vsel %vm445, %v869, 0
        %v935 = vsel %vm445, %v870, 0
        %937 = vmatprep.subr.bf16.mxu0 0
        %938 = vmatpush1.bf16.msra.mxu0 %v883
        %939 = vmatprep.subr.bf16.mxu0 0
        %940 = vmatpush1.bf16.msra.mxu0 %v884
        %941 = vmatprep.subr.bf16.mxu0 0
        %942 = vmatpush1.bf16.msra.mxu0 %v885
        %943 = vmatprep.subr.bf16.mxu0 0
        %944 = vmatpush1.bf16.msra.mxu0 0
        %945 = vmatprep.subr.bf16.mxu0 0
        %946 = vmatpush1.bf16.msra.mxu0 0
        %947 = vmatprep.subr.bf16.mxu0 0
        %948 = vmatpush1.bf16.msra.mxu0 0
        %949 = vmatprep.subr.bf16.mxu0 0
        %950 = vmatpush1.bf16.msra.mxu0 0
        %951 = vmatprep.subr.bf16.mxu0 0
        %952 = vmatpush1.bf16.msra.mxu0 0
        %953 = vmatprep.subr.bf16.mxu0 0
        %954 = vmatpush1.bf16.msra.mxu0 0
        %955 = vmatprep.subr.bf16.mxu0 0
        %956 = vmatpush1.bf16.msra.mxu0 0
        %957 = vmatprep.subr.bf16.mxu0 0
        %958 = vmatpush1.bf16.msra.mxu0 0
        %959 = vmatprep.subr.bf16.mxu0 0
        %960 = vmatpush1.bf16.msra.mxu0 0
        %961 = vmatprep.subr.bf16.mxu0 0
        %962 = vmatpush1.bf16.msra.mxu0 0
        %963 = vmatprep.subr.bf16.mxu0 0
        %964 = vmatpush1.bf16.msra.mxu0 0
        %965 = vmatprep.subr.bf16.mxu0 0
        %966 = vmatpush1.bf16.msra.mxu0 0
        %967 = vmatprep.subr.bf16.mxu0 0
        %968 = vmatpush1.bf16.msra.mxu0 0
        %969 = vmatprep.mubr.bf16.mxu0 0
        %970 = vmatmul.mubr.bf16.gmra.mrb[0].mxu0 %v890
        %v971 = vpop.f32.mrb[0].mxu0
        %v972 = vadd.f32 0.0, %v971
        %v973 = vpop.f32.mrb[0].mxu0
        %v974 = vpop.f32.mrb[0].mxu0
        %v975 = vadd.f32 0.0, %v974
        %v976 = vpop.f32.mrb[0].mxu0
        %977 = vmatprep.mubr.bf16.mxu0 0
        %978 = vmatmul.mubr.bf16.gmra.mrb[0].mxu0 %v893
        %v979 = vpop.f32.mrb[0].mxu0
        %v980 = vadd.f32 0.0, %v979
        %v981 = vpop.f32.mrb[0].mxu0
        %v982 = vpop.f32.mrb[0].mxu0
        %v983 = vadd.f32 0.0, %v982
        %v984 = vpop.f32.mrb[0].mxu0
        %985 = vmatprep.mubr.bf16.mxu0 0
        %986 = vmatmul.mubr.bf16.gmra.mrb[0].mxu0 %v896
        %v987 = vpop.f32.mrb[0].mxu0
        %v988 = vadd.f32 0.0, %v987
        %v989 = vpop.f32.mrb[0].mxu0
        %v990 = vpop.f32.mrb[0].mxu0
        %v991 = vadd.f32 0.0, %v990
        %v992 = vpop.f32.mrb[0].mxu0
        %993 = vmatprep.mubr.bf16.mxu0 0
        %994 = vmatmul.mubr.bf16.gmra.mrb[0].mxu0 %v899
        %v995 = vpop.f32.mrb[0].mxu0
        %v996 = vadd.f32 0.0, %v995
        %v997 = vpop.f32.mrb[0].mxu0
        %v998 = vpop.f32.mrb[0].mxu0
        %v999 = vadd.f32 0.0, %v998
        %v1000 = vpop.f32.mrb[0].mxu0
        %1001 = vmatprep.mubr.bf16.mxu0 0
        %1002 = vmatmul.mubr.bf16.gmra.mrb[0].mxu0 %v902
        %v1003 = vpop.f32.mrb[0].mxu0
        %v1004 = vadd.f32 0.0, %v1003
        %v1005 = vpop.f32.mrb[0].mxu0
        %v1006 = vpop.f32.mrb[0].mxu0
        %v1007 = vadd.f32 0.0, %v1006
        %v1008 = vpop.f32.mrb[0].mxu0
        %1009 = vmatprep.mubr.bf16.mxu0 0
        %1010 = vmatmul.mubr.bf16.gmra.mrb[0].mxu0 %v905
        %v1011 = vpop.f32.mrb[0].mxu0
        %v1012 = vadd.f32 0.0, %v1011
        %v1013 = vpop.f32.mrb[0].mxu0
        %v1014 = vpop.f32.mrb[0].mxu0
        %v1015 = vadd.f32 0.0, %v1014
        %v1016 = vpop.f32.mrb[0].mxu0
        %1017 = vmatprep.mubr.bf16.mxu0 0
        %1018 = vmatmul.mubr.bf16.gmra.mrb[0].mxu0 %v908
        %v1019 = vpop.f32.mrb[0].mxu0
        %v1020 = vadd.f32 0.0, %v1019
        %v1021 = vpop.f32.mrb[0].mxu0
        %v1022 = vpop.f32.mrb[0].mxu0
        %v1023 = vadd.f32 0.0, %v1022
        %v1024 = vpop.f32.mrb[0].mxu0
        %1025 = vmatprep.mubr.bf16.mxu0 0
        %1026 = vmatmul.mubr.bf16.gmra.mrb[0].mxu0 %v911
        %v1027 = vpop.f32.mrb[0].mxu0
        %v1028 = vadd.f32 0.0, %v1027
        %v1029 = vpop.f32.mrb[0].mxu0
        %v1030 = vpop.f32.mrb[0].mxu0
        %v1031 = vadd.f32 0.0, %v1030
        %v1032 = vpop.f32.mrb[0].mxu0
        %1033 = vmatprep.mubr.bf16.mxu0 0
        %1034 = vmatmul.mubr.bf16.gmra.mrb[0].mxu0 %v914
        %v1035 = vpop.f32.mrb[0].mxu0
        %v1036 = vadd.f32 0.0, %v1035
        %v1037 = vpop.f32.mrb[0].mxu0
        %v1038 = vpop.f32.mrb[0].mxu0
        %v1039 = vadd.f32 0.0, %v1038
        %v1040 = vpop.f32.mrb[0].mxu0
        %1041 = vmatprep.mubr.bf16.mxu0 0
        %1042 = vmatmul.mubr.bf16.gmra.mrb[0].mxu0 %v917
        %v1043 = vpop.f32.mrb[0].mxu0
        %v1044 = vadd.f32 0.0, %v1043
        %v1045 = vpop.f32.mrb[0].mxu0
        %v1046 = vpop.f32.mrb[0].mxu0
        %v1047 = vadd.f32 0.0, %v1046
        %v1048 = vpop.f32.mrb[0].mxu0
        %1049 = vmatprep.mubr.bf16.mxu0 0
        %1050 = vmatmul.mubr.bf16.gmra.mrb[0].mxu0 %v920
        %v1051 = vpop.f32.mrb[0].mxu0
        %v1052 = vadd.f32 0.0, %v1051
        %v1053 = vpop.f32.mrb[0].mxu0
        %v1054 = vpop.f32.mrb[0].mxu0
        %v1055 = vadd.f32 0.0, %v1054
        %v1056 = vpop.f32.mrb[0].mxu0
        %1057 = vmatprep.mubr.bf16.mxu0 0
        %1058 = vmatmul.mubr.bf16.gmra.mrb[0].mxu0 %v923
        %v1059 = vpop.f32.mrb[0].mxu0
        %v1060 = vadd.f32 0.0, %v1059
        %v1061 = vpop.f32.mrb[0].mxu0
        %v1062 = vpop.f32.mrb[0].mxu0
        %v1063 = vadd.f32 0.0, %v1062
        %v1064 = vpop.f32.mrb[0].mxu0
        %1065 = vmatprep.mubr.bf16.mxu0 0
        %1066 = vmatmul.mubr.bf16.gmra.mrb[0].mxu0 %v926
        %v1067 = vpop.f32.mrb[0].mxu0
        %v1068 = vadd.f32 0.0, %v1067
        %v1069 = vpop.f32.mrb[0].mxu0
        %v1070 = vpop.f32.mrb[0].mxu0
        %v1071 = vadd.f32 0.0, %v1070
        %v1072 = vpop.f32.mrb[0].mxu0
        %1073 = vmatprep.mubr.bf16.mxu0 0
        %1074 = vmatmul.mubr.bf16.gmra.mrb[0].mxu0 %v929
        %v1075 = vpop.f32.mrb[0].mxu0
        %v1076 = vadd.f32 0.0, %v1075
        %v1077 = vpop.f32.mrb[0].mxu0
        %v1078 = vpop.f32.mrb[0].mxu0
        %v1079 = vadd.f32 0.0, %v1078
        %v1080 = vpop.f32.mrb[0].mxu0
        %1081 = vmatprep.mubr.bf16.mxu0 0
        %1082 = vmatmul.mubr.bf16.gmra.mrb[0].mxu0 %v932
        %v1083 = vpop.f32.mrb[0].mxu0
        %v1084 = vadd.f32 0.0, %v1083
        %v1085 = vpop.f32.mrb[0].mxu0
        %v1086 = vpop.f32.mrb[0].mxu0
        %v1087 = vadd.f32 0.0, %v1086
        %v1088 = vpop.f32.mrb[0].mxu0
        %1089 = vmatprep.mubr.bf16.mxu0 0
        %1090 = vmatmul.mubr.bf16.gmra.mrb[0].mxu0 %v935
        %v1091 = vpop.f32.mrb[0].mxu0
        %v1092 = vadd.f32 0.0, %v1091
        %v1093 = vpop.f32.mrb[0].mxu0
        %v1094 = vpop.f32.mrb[0].mxu0
        %v1095 = vadd.f32 0.0, %v1094
        %v1096 = vpop.f32.mrb[0].mxu0
        %1097 = vdwg.mxu0
        %v1098 = vadd.f32 %v752, %v972
        %v1099 = vadd.f32 %v753, %v975
        %v1100 = vadd.f32 %v754, %v980
        %v1101 = vadd.f32 %v755, %v983
        %v1102 = vadd.f32 %v756, %v988
        %v1103 = vadd.f32 %v757, %v991
        %v1104 = vadd.f32 %v758, %v996
        %v1105 = vadd.f32 %v759, %v999
        %v1106 = vadd.f32 %v760, %v1004
        %v1107 = vadd.f32 %v761, %v1007
        %v1108 = vadd.f32 %v762, %v1012
        %v1109 = vadd.f32 %v763, %v1015
        %v1110 = vadd.f32 %v764, %v1020
        %v1111 = vadd.f32 %v765, %v1023
        %v1112 = vadd.f32 %v766, %v1028
        %v1113 = vadd.f32 %v767, %v1031
        %v1114 = vadd.f32 %v768, %v1036
        %v1115 = vadd.f32 %v769, %v1039
        %v1116 = vadd.f32 %v770, %v1044
        %v1117 = vadd.f32 %v771, %v1047
        %v1118 = vadd.f32 %v772, %v1052
        %v1119 = vadd.f32 %v773, %v1055
        %v1120 = vadd.f32 %v774, %v1060
        %v1121 = vadd.f32 %v775, %v1063
        %v1122 = vadd.f32 %v776, %v1068
        %v1123 = vadd.f32 %v777, %v1071
        %v1124 = vadd.f32 %v778, %v1076
        %v1125 = vadd.f32 %v779, %v1079
        %v1126 = vadd.f32 %v780, %v1084
        %v1127 = vadd.f32 %v781, %v1087
        %v1128 = vadd.f32 %v782, %v1092
        %v1129 = vadd.f32 %v783, %v1095
        %1130 = vst.msk [vmem:[#allocation2] sm:$0xff] %vm244, %v1098
        %1131 = vst.msk [vmem:[#allocation2 + $0x8] sm:$0xff] %vm244, %v1099
        %1132 = vst.msk [vmem:[#allocation2 + $0x10] sm:$0xff] %vm244, %v1100
        %1133 = vst.msk [vmem:[#allocation2 + $0x18] sm:$0xff] %vm244, %v1101
        %1134 = vst.msk [vmem:[#allocation2 + $0x20] sm:$0xff] %vm244, %v1102
        %1135 = vst.msk [vmem:[#allocation2 + $0x28] sm:$0xff] %vm244, %v1103
        %1136 = vst.msk [vmem:[#allocation2 + $0x30] sm:$0xff] %vm244, %v1104
        %1137 = vst.msk [vmem:[#allocation2 + $0x38] sm:$0xff] %vm244, %v1105
        %1138 = vst.msk [vmem:[#allocation2 + $0x40] sm:$0xff] %vm244, %v1106
        %1139 = vst.msk [vmem:[#allocation2 + $0x48] sm:$0xff] %vm244, %v1107
        %1140 = vst.msk [vmem:[#allocation2 + $0x50] sm:$0xff] %vm244, %v1108
        %1141 = vst.msk [vmem:[#allocation2 + $0x58] sm:$0xff] %vm244, %v1109
        %1142 = vst.msk [vmem:[#allocation2 + $0x60] sm:$0xff] %vm244, %v1110
        %1143 = vst.msk [vmem:[#allocation2 + $0x68] sm:$0xff] %vm244, %v1111
        %1144 = vst.msk [vmem:[#allocation2 + $0x70] sm:$0xff] %vm244, %v1112
        %1145 = vst.msk [vmem:[#allocation2 + $0x78] sm:$0xff] %vm244, %v1113
        %1146 = vst.msk [vmem:[#allocation2 + $0x80] sm:$0xff] %vm244, %v1114
        %1147 = vst.msk [vmem:[#allocation2 + $0x88] sm:$0xff] %vm244, %v1115
        %1148 = vst.msk [vmem:[#allocation2 + $0x90] sm:$0xff] %vm244, %v1116
        %1149 = vst.msk [vmem:[#allocation2 + $0x98] sm:$0xff] %vm244, %v1117
        %1150 = vst.msk [vmem:[#allocation2 + $0xa0] sm:$0xff] %vm244, %v1118
        %1151 = vst.msk [vmem:[#allocation2 + $0xa8] sm:$0xff] %vm244, %v1119
        %1152 = vst.msk [vmem:[#allocation2 + $0xb0] sm:$0xff] %vm244, %v1120
        %1153 = vst.msk [vmem:[#allocation2 + $0xb8] sm:$0xff] %vm244, %v1121
        %1154 = vst.msk [vmem:[#allocation2 + $0xc0] sm:$0xff] %vm244, %v1122
        %1155 = vst.msk [vmem:[#allocation2 + $0xc8] sm:$0xff] %vm244, %v1123
        %1156 = vst.msk [vmem:[#allocation2 + $0xd0] sm:$0xff] %vm244, %v1124
        %1157 = vst.msk [vmem:[#allocation2 + $0xd8] sm:$0xff] %vm244, %v1125
        %1158 = vst.msk [vmem:[#allocation2 + $0xe0] sm:$0xff] %vm244, %v1126
        %1159 = vst.msk [vmem:[#allocation2 + $0xe8] sm:$0xff] %vm244, %v1127
        %1160 = vst.msk [vmem:[#allocation2 + $0xf0] sm:$0xff] %vm244, %v1128
        %1161 = vst.msk [vmem:[#allocation2 + $0xf8] sm:$0xff] %vm244, %v1129
        %s1162 = scalar_lea.vmem %s216, 16 [#allocation3]
        %v1163 = vld [vmem:[%s1162] sm:$0xf]
        %v1164 = vld [vmem:[%s1162 + $0x4] sm:$0xf]
        %v1165 = vld [vmem:[%s1162 + $0x8] sm:$0xf]
        %v1166 = vld [vmem:[%s1162 + $0xc] sm:$0xf]
        %v1167 = vld [vmem:[%s1162 + $0x10] sm:$0xf]
        %v1168 = vld [vmem:[%s1162 + $0x14] sm:$0xf]
        %v1169 = vld [vmem:[%s1162 + $0x18] sm:$0xf]
        %v1170 = vld [vmem:[%s1162 + $0x1c] sm:$0xf]
        %v1171 = vld [vmem:[%s1162 + $0x20] sm:$0xf]
        %v1172 = vld [vmem:[%s1162 + $0x24] sm:$0xf]
        %v1173 = vld [vmem:[%s1162 + $0x28] sm:$0xf]
        %v1174 = vld [vmem:[%s1162 + $0x2c] sm:$0xf]
        %v1175 = vld [vmem:[%s1162 + $0x30] sm:$0xf]
        %v1176 = vld [vmem:[%s1162 + $0x34] sm:$0xf]
        %v1177 = vld [vmem:[%s1162 + $0x38] sm:$0xf]
        %v1178 = vld [vmem:[%s1162 + $0x3c] sm:$0xf]
        %v1179 = vld [vmem:[%s1162 + $0x40] sm:$0xf]
        %v1180 = vld [vmem:[%s1162 + $0x44] sm:$0xf]
        %v1181 = vld [vmem:[%s1162 + $0x48] sm:$0xf]
        %v1182 = vld [vmem:[%s1162 + $0x4c] sm:$0xf]
        %v1183 = vld [vmem:[%s1162 + $0x50] sm:$0xf]
        %v1184 = vld [vmem:[%s1162 + $0x54] sm:$0xf]
        %v1185 = vld [vmem:[%s1162 + $0x58] sm:$0xf]
        %v1186 = vld [vmem:[%s1162 + $0x5c] sm:$0xf]
        %v1187 = vld [vmem:[%s1162 + $0x60] sm:$0xf]
        %v1188 = vld [vmem:[%s1162 + $0x64] sm:$0xf]
        %v1189 = vld [vmem:[%s1162 + $0x68] sm:$0xf]
        %v1190 = vld [vmem:[%s1162 + $0x6c] sm:$0xf]
        %v1191 = vld [vmem:[%s1162 + $0x70] sm:$0xf]
        %v1192 = vld [vmem:[%s1162 + $0x74] sm:$0xf]
        %v1193 = vld [vmem:[%s1162 + $0x78] sm:$0xf]
        %v1194 = vld [vmem:[%s1162 + $0x7c] sm:$0xf]
        %v1195 = vld [vmem:[#allocation2] sm:$0xff]
        %v1196 = vld [vmem:[#allocation2 + $0x8] sm:$0xff]
        %v1197 = vld [vmem:[#allocation2 + $0x10] sm:$0xff]
        %v1198 = vld [vmem:[#allocation2 + $0x18] sm:$0xff]
        %v1199 = vld [vmem:[#allocation2 + $0x20] sm:$0xff]
        %v1200 = vld [vmem:[#allocation2 + $0x28] sm:$0xff]
        %v1201 = vld [vmem:[#allocation2 + $0x30] sm:$0xff]
        %v1202 = vld [vmem:[#allocation2 + $0x38] sm:$0xff]
        %v1203 = vld [vmem:[#allocation2 + $0x40] sm:$0xff]
        %v1204 = vld [vmem:[#allocation2 + $0x48] sm:$0xff]
        %v1205 = vld [vmem:[#allocation2 + $0x50] sm:$0xff]
        %v1206 = vld [vmem:[#allocation2 + $0x58] sm:$0xff]
        %v1207 = vld [vmem:[#allocation2 + $0x60] sm:$0xff]
        %v1208 = vld [vmem:[#allocation2 + $0x68] sm:$0xff]
        %v1209 = vld [vmem:[#allocation2 + $0x70] sm:$0xff]
        %v1210 = vld [vmem:[#allocation2 + $0x78] sm:$0xff]
        %v1211 = vld [vmem:[#allocation2 + $0x80] sm:$0xff]
        %v1212 = vld [vmem:[#allocation2 + $0x88] sm:$0xff]
        %v1213 = vld [vmem:[#allocation2 + $0x90] sm:$0xff]
        %v1214 = vld [vmem:[#allocation2 + $0x98] sm:$0xff]
        %v1215 = vld [vmem:[#allocation2 + $0xa0] sm:$0xff]
        %v1216 = vld [vmem:[#allocation2 + $0xa8] sm:$0xff]
        %v1217 = vld [vmem:[#allocation2 + $0xb0] sm:$0xff]
        %v1218 = vld [vmem:[#allocation2 + $0xb8] sm:$0xff]
        %v1219 = vld [vmem:[#allocation2 + $0xc0] sm:$0xff]
        %v1220 = vld [vmem:[#allocation2 + $0xc8] sm:$0xff]
        %v1221 = vld [vmem:[#allocation2 + $0xd0] sm:$0xff]
        %v1222 = vld [vmem:[#allocation2 + $0xd8] sm:$0xff]
        %v1223 = vld [vmem:[#allocation2 + $0xe0] sm:$0xff]
        %v1224 = vld [vmem:[#allocation2 + $0xe8] sm:$0xff]
        %v1225 = vld [vmem:[#allocation2 + $0xf0] sm:$0xff]
        %v1226 = vld [vmem:[#allocation2 + $0xf8] sm:$0xff]
        %s1227 = scalar_lea.vmem %s1, 48
        %v1228 = vld [vmem:[%s1227] sm:$0xf]
        %v1229 = vld [vmem:[%s1227 + $0x4] sm:$0xf]
        %v1230 = vld [vmem:[%s1227 + $0x8] sm:$0xf]
        %v1231 = vld [vmem:[%s1227 + $0xc] sm:$0xf]
        %v1232 = vld [vmem:[%s1227 + $0x10] sm:$0xf]
        %v1233 = vld [vmem:[%s1227 + $0x14] sm:$0xf]
        %v1266 = vunpack.c.l.b16 %v1163
        %v1267 = vunpack.c.l.b16 %v1164
        %v1268 = vunpack.c.l.b16 %v1165
        %v1269 = vunpack.c.l.b16 %v1166
        %v1270 = vunpack.c.l.b16 %v1167
        %v1271 = vunpack.c.l.b16 %v1168
        %v1272 = vunpack.c.l.b16 %v1169
        %v1273 = vunpack.c.l.b16 %v1170
        %v1274 = vunpack.c.l.b16 %v1171
        %v1275 = vunpack.c.l.b16 %v1172
        %v1276 = vunpack.c.l.b16 %v1173
        %v1277 = vunpack.c.l.b16 %v1174
        %v1278 = vunpack.c.l.b16 %v1175
        %v1279 = vunpack.c.l.b16 %v1176
        %v1280 = vunpack.c.l.b16 %v1177
        %v1281 = vunpack.c.l.b16 %v1178
        %v1282 = vunpack.c.l.b16 %v1179
        %v1283 = vunpack.c.l.b16 %v1180
        %v1284 = vunpack.c.l.b16 %v1181
        %v1285 = vunpack.c.l.b16 %v1182
        %v1286 = vunpack.c.l.b16 %v1183
        %v1287 = vunpack.c.l.b16 %v1184
        %v1288 = vunpack.c.l.b16 %v1185
        %v1289 = vunpack.c.l.b16 %v1186
        %v1290 = vunpack.c.l.b16 %v1187
        %v1291 = vunpack.c.l.b16 %v1188
        %v1292 = vunpack.c.l.b16 %v1189
        %v1293 = vunpack.c.l.b16 %v1190
        %v1294 = vunpack.c.l.b16 %v1191
        %v1295 = vunpack.c.l.b16 %v1192
        %v1296 = vunpack.c.l.b16 %v1193
        %v1297 = vunpack.c.l.b16 %v1194
        %v1298 = vpack.c.b16 %v1267, %v1266
        %v1299 = vpack.c.b16 %v1269, %v1268
        %v1300 = vpack.c.b16 %v1271, %v1270
        %v1301 = vpack.c.b16 %v1273, %v1272
        %v1302 = vpack.c.b16 %v1275, %v1274
        %v1303 = vpack.c.b16 %v1277, %v1276
        %v1304 = vpack.c.b16 %v1279, %v1278
        %v1305 = vpack.c.b16 %v1281, %v1280
        %v1306 = vpack.c.b16 %v1283, %v1282
        %v1307 = vpack.c.b16 %v1285, %v1284
        %v1308 = vpack.c.b16 %v1287, %v1286
        %v1309 = vpack.c.b16 %v1289, %v1288
        %v1310 = vpack.c.b16 %v1291, %v1290
        %v1311 = vpack.c.b16 %v1293, %v1292
        %v1312 = vpack.c.b16 %v1295, %v1294
        %v1313 = vpack.c.b16 %v1297, %v1296
        %v1320 = vunpack.c.l.b16 %v1228
        %v1321 = vunpack.c.l.b16 %v1229
        %v1322 = vunpack.c.l.b16 %v1230
        %v1323 = vunpack.c.l.b16 %v1231
        %v1324 = vunpack.c.l.b16 %v1232
        %v1325 = vunpack.c.l.b16 %v1233
        %v1326 = vpack.c.b16 %v1321, %v1320
        %v1327 = vpack.c.b16 %v1323, %v1322
        %v1328 = vpack.c.b16 %v1325, %v1324
        %v1333 = vsel %vm445, %v1298, 0
        %v1336 = vsel %vm445, %v1299, 0
        %v1339 = vsel %vm445, %v1300, 0
        %v1342 = vsel %vm445, %v1301, 0
        %v1345 = vsel %vm445, %v1302, 0
        %v1348 = vsel %vm445, %v1303, 0
        %v1351 = vsel %vm445, %v1304, 0
        %v1354 = vsel %vm445, %v1305, 0
        %v1357 = vsel %vm445, %v1306, 0
        %v1360 = vsel %vm445, %v1307, 0
        %v1363 = vsel %vm445, %v1308, 0
        %v1366 = vsel %vm445, %v1309, 0
        %v1369 = vsel %vm445, %v1310, 0
        %v1372 = vsel %vm445, %v1311, 0
        %v1375 = vsel %vm445, %v1312, 0
        %v1378 = vsel %vm445, %v1313, 0
        %1380 = vmatprep.subr.bf16.mxu0 0
        %1381 = vmatpush1.bf16.msra.mxu0 %v1326
        %1382 = vmatprep.subr.bf16.mxu0 0
        %1383 = vmatpush1.bf16.msra.mxu0 %v1327
        %1384 = vmatprep.subr.bf16.mxu0 0
        %1385 = vmatpush1.bf16.msra.mxu0 %v1328
        %1386 = vmatprep.subr.bf16.mxu0 0
        %1387 = vmatpush1.bf16.msra.mxu0 0
        %1388 = vmatprep.subr.bf16.mxu0 0
        %1389 = vmatpush1.bf16.msra.mxu0 0
        %1390 = vmatprep.subr.bf16.mxu0 0
        %1391 = vmatpush1.bf16.msra.mxu0 0
        %1392 = vmatprep.subr.bf16.mxu0 0
        %1393 = vmatpush1.bf16.msra.mxu0 0
        %1394 = vmatprep.subr.bf16.mxu0 0
        %1395 = vmatpush1.bf16.msra.mxu0 0
        %1396 = vmatprep.subr.bf16.mxu0 0
        %1397 = vmatpush1.bf16.msra.mxu0 0
        %1398 = vmatprep.subr.bf16.mxu0 0
        %1399 = vmatpush1.bf16.msra.mxu0 0
        %1400 = vmatprep.subr.bf16.mxu0 0
        %1401 = vmatpush1.bf16.msra.mxu0 0
        %1402 = vmatprep.subr.bf16.mxu0 0
        %1403 = vmatpush1.bf16.msra.mxu0 0
        %1404 = vmatprep.subr.bf16.mxu0 0
        %1405 = vmatpush1.bf16.msra.mxu0 0
        %1406 = vmatprep.subr.bf16.mxu0 0
        %1407 = vmatpush1.bf16.msra.mxu0 0
        %1408 = vmatprep.subr.bf16.mxu0 0
        %1409 = vmatpush1.bf16.msra.mxu0 0
        %1410 = vmatprep.subr.bf16.mxu0 0
        %1411 = vmatpush1.bf16.msra.mxu0 0
        %1412 = vmatprep.mubr.bf16.mxu0 0
        %1413 = vmatmul.mubr.bf16.gmra.mrb[0].mxu0 %v1333
        %v1414 = vpop.f32.mrb[0].mxu0
        %v1415 = vadd.f32 0.0, %v1414
        %v1416 = vpop.f32.mrb[0].mxu0
        %v1417 = vpop.f32.mrb[0].mxu0
        %v1418 = vadd.f32 0.0, %v1417
        %v1419 = vpop.f32.mrb[0].mxu0
        %1420 = vmatprep.mubr.bf16.mxu0 0
        %1421 = vmatmul.mubr.bf16.gmra.mrb[0].mxu0 %v1336
        %v1422 = vpop.f32.mrb[0].mxu0
        %v1423 = vadd.f32 0.0, %v1422
        %v1424 = vpop.f32.mrb[0].mxu0
        %v1425 = vpop.f32.mrb[0].mxu0
        %v1426 = vadd.f32 0.0, %v1425
        %v1427 = vpop.f32.mrb[0].mxu0
        %1428 = vmatprep.mubr.bf16.mxu0 0
        %1429 = vmatmul.mubr.bf16.gmra.mrb[0].mxu0 %v1339
        %v1430 = vpop.f32.mrb[0].mxu0
        %v1431 = vadd.f32 0.0, %v1430
        %v1432 = vpop.f32.mrb[0].mxu0
        %v1433 = vpop.f32.mrb[0].mxu0
        %v1434 = vadd.f32 0.0, %v1433
        %v1435 = vpop.f32.mrb[0].mxu0
        %1436 = vmatprep.mubr.bf16.mxu0 0
        %1437 = vmatmul.mubr.bf16.gmra.mrb[0].mxu0 %v1342
        %v1438 = vpop.f32.mrb[0].mxu0
        %v1439 = vadd.f32 0.0, %v1438
        %v1440 = vpop.f32.mrb[0].mxu0
        %v1441 = vpop.f32.mrb[0].mxu0
        %v1442 = vadd.f32 0.0, %v1441
        %v1443 = vpop.f32.mrb[0].mxu0
        %1444 = vmatprep.mubr.bf16.mxu0 0
        %1445 = vmatmul.mubr.bf16.gmra.mrb[0].mxu0 %v1345
        %v1446 = vpop.f32.mrb[0].mxu0
        %v1447 = vadd.f32 0.0, %v1446
        %v1448 = vpop.f32.mrb[0].mxu0
        %v1449 = vpop.f32.mrb[0].mxu0
        %v1450 = vadd.f32 0.0, %v1449
        %v1451 = vpop.f32.mrb[0].mxu0
        %1452 = vmatprep.mubr.bf16.mxu0 0
        %1453 = vmatmul.mubr.bf16.gmra.mrb[0].mxu0 %v1348
        %v1454 = vpop.f32.mrb[0].mxu0
        %v1455 = vadd.f32 0.0, %v1454
        %v1456 = vpop.f32.mrb[0].mxu0
        %v1457 = vpop.f32.mrb[0].mxu0
        %v1458 = vadd.f32 0.0, %v1457
        %v1459 = vpop.f32.mrb[0].mxu0
        %1460 = vmatprep.mubr.bf16.mxu0 0
        %1461 = vmatmul.mubr.bf16.gmra.mrb[0].mxu0 %v1351
        %v1462 = vpop.f32.mrb[0].mxu0
        %v1463 = vadd.f32 0.0, %v1462
        %v1464 = vpop.f32.mrb[0].mxu0
        %v1465 = vpop.f32.mrb[0].mxu0
        %v1466 = vadd.f32 0.0, %v1465
        %v1467 = vpop.f32.mrb[0].mxu0
        %1468 = vmatprep.mubr.bf16.mxu0 0
        %1469 = vmatmul.mubr.bf16.gmra.mrb[0].mxu0 %v1354
        %v1470 = vpop.f32.mrb[0].mxu0
        %v1471 = vadd.f32 0.0, %v1470
        %v1472 = vpop.f32.mrb[0].mxu0
        %v1473 = vpop.f32.mrb[0].mxu0
        %v1474 = vadd.f32 0.0, %v1473
        %v1475 = vpop.f32.mrb[0].mxu0
        %1476 = vmatprep.mubr.bf16.mxu0 0
        %1477 = vmatmul.mubr.bf16.gmra.mrb[0].mxu0 %v1357
        %v1478 = vpop.f32.mrb[0].mxu0
        %v1479 = vadd.f32 0.0, %v1478
        %v1480 = vpop.f32.mrb[0].mxu0
        %v1481 = vpop.f32.mrb[0].mxu0
        %v1482 = vadd.f32 0.0, %v1481
        %v1483 = vpop.f32.mrb[0].mxu0
        %1484 = vmatprep.mubr.bf16.mxu0 0
        %1485 = vmatmul.mubr.bf16.gmra.mrb[0].mxu0 %v1360
        %v1486 = vpop.f32.mrb[0].mxu0
        %v1487 = vadd.f32 0.0, %v1486
        %v1488 = vpop.f32.mrb[0].mxu0
        %v1489 = vpop.f32.mrb[0].mxu0
        %v1490 = vadd.f32 0.0, %v1489
        %v1491 = vpop.f32.mrb[0].mxu0
        %1492 = vmatprep.mubr.bf16.mxu0 0
        %1493 = vmatmul.mubr.bf16.gmra.mrb[0].mxu0 %v1363
        %v1494 = vpop.f32.mrb[0].mxu0
        %v1495 = vadd.f32 0.0, %v1494
        %v1496 = vpop.f32.mrb[0].mxu0
        %v1497 = vpop.f32.mrb[0].mxu0
        %v1498 = vadd.f32 0.0, %v1497
        %v1499 = vpop.f32.mrb[0].mxu0
        %1500 = vmatprep.mubr.bf16.mxu0 0
        %1501 = vmatmul.mubr.bf16.gmra.mrb[0].mxu0 %v1366
        %v1502 = vpop.f32.mrb[0].mxu0
        %v1503 = vadd.f32 0.0, %v1502
        %v1504 = vpop.f32.mrb[0].mxu0
        %v1505 = vpop.f32.mrb[0].mxu0
        %v1506 = vadd.f32 0.0, %v1505
        %v1507 = vpop.f32.mrb[0].mxu0
        %1508 = vmatprep.mubr.bf16.mxu0 0
        %1509 = vmatmul.mubr.bf16.gmra.mrb[0].mxu0 %v1369
        %v1510 = vpop.f32.mrb[0].mxu0
        %v1511 = vadd.f32 0.0, %v1510
        %v1512 = vpop.f32.mrb[0].mxu0
        %v1513 = vpop.f32.mrb[0].mxu0
        %v1514 = vadd.f32 0.0, %v1513
        %v1515 = vpop.f32.mrb[0].mxu0
        %1516 = vmatprep.mubr.bf16.mxu0 0
        %1517 = vmatmul.mubr.bf16.gmra.mrb[0].mxu0 %v1372
        %v1518 = vpop.f32.mrb[0].mxu0
        %v1519 = vadd.f32 0.0, %v1518
        %v1520 = vpop.f32.mrb[0].mxu0
        %v1521 = vpop.f32.mrb[0].mxu0
        %v1522 = vadd.f32 0.0, %v1521
        %v1523 = vpop.f32.mrb[0].mxu0
        %1524 = vmatprep.mubr.bf16.mxu0 0
        %1525 = vmatmul.mubr.bf16.gmra.mrb[0].mxu0 %v1375
        %v1526 = vpop.f32.mrb[0].mxu0
        %v1527 = vadd.f32 0.0, %v1526
        %v1528 = vpop.f32.mrb[0].mxu0
        %v1529 = vpop.f32.mrb[0].mxu0
        %v1530 = vadd.f32 0.0, %v1529
        %v1531 = vpop.f32.mrb[0].mxu0
        %1532 = vmatprep.mubr.bf16.mxu0 0
        %1533 = vmatmul.mubr.bf16.gmra.mrb[0].mxu0 %v1378
        %v1534 = vpop.f32.mrb[0].mxu0
        %v1535 = vadd.f32 0.0, %v1534
        %v1536 = vpop.f32.mrb[0].mxu0
        %v1537 = vpop.f32.mrb[0].mxu0
        %v1538 = vadd.f32 0.0, %v1537
        %v1539 = vpop.f32.mrb[0].mxu0
        %1540 = vdwg.mxu0
        %v1541 = vadd.f32 %v1195, %v1415
        %v1542 = vadd.f32 %v1196, %v1418
        %v1543 = vadd.f32 %v1197, %v1423
        %v1544 = vadd.f32 %v1198, %v1426
        %v1545 = vadd.f32 %v1199, %v1431
        %v1546 = vadd.f32 %v1200, %v1434
        %v1547 = vadd.f32 %v1201, %v1439
        %v1548 = vadd.f32 %v1202, %v1442
        %v1549 = vadd.f32 %v1203, %v1447
        %v1550 = vadd.f32 %v1204, %v1450
        %v1551 = vadd.f32 %v1205, %v1455
        %v1552 = vadd.f32 %v1206, %v1458
        %v1553 = vadd.f32 %v1207, %v1463
        %v1554 = vadd.f32 %v1208, %v1466
        %v1555 = vadd.f32 %v1209, %v1471
        %v1556 = vadd.f32 %v1210, %v1474
        %v1557 = vadd.f32 %v1211, %v1479
        %v1558 = vadd.f32 %v1212, %v1482
        %v1559 = vadd.f32 %v1213, %v1487
        %v1560 = vadd.f32 %v1214, %v1490
        %v1561 = vadd.f32 %v1215, %v1495
        %v1562 = vadd.f32 %v1216, %v1498
        %v1563 = vadd.f32 %v1217, %v1503
        %v1564 = vadd.f32 %v1218, %v1506
        %v1565 = vadd.f32 %v1219, %v1511
        %v1566 = vadd.f32 %v1220, %v1514
        %v1567 = vadd.f32 %v1221, %v1519
        %v1568 = vadd.f32 %v1222, %v1522
        %v1569 = vadd.f32 %v1223, %v1527
        %v1570 = vadd.f32 %v1224, %v1530
        %v1571 = vadd.f32 %v1225, %v1535
        %v1572 = vadd.f32 %v1226, %v1538
        %1573 = vst.msk [vmem:[#allocation2] sm:$0xff] %vm244, %v1541
        %1574 = vst.msk [vmem:[#allocation2 + $0x8] sm:$0xff] %vm244, %v1542
        %1575 = vst.msk [vmem:[#allocation2 + $0x10] sm:$0xff] %vm244, %v1543
        %1576 = vst.msk [vmem:[#allocation2 + $0x18] sm:$0xff] %vm244, %v1544
        %1577 = vst.msk [vmem:[#allocation2 + $0x20] sm:$0xff] %vm244, %v1545
        %1578 = vst.msk [vmem:[#allocation2 + $0x28] sm:$0xff] %vm244, %v1546
        %1579 = vst.msk [vmem:[#allocation2 + $0x30] sm:$0xff] %vm244, %v1547
        %1580 = vst.msk [vmem:[#allocation2 + $0x38] sm:$0xff] %vm244, %v1548
        %1581 = vst.msk [vmem:[#allocation2 + $0x40] sm:$0xff] %vm244, %v1549
        %1582 = vst.msk [vmem:[#allocation2 + $0x48] sm:$0xff] %vm244, %v1550
        %1583 = vst.msk [vmem:[#allocation2 + $0x50] sm:$0xff] %vm244, %v1551
        %1584 = vst.msk [vmem:[#allocation2 + $0x58] sm:$0xff] %vm244, %v1552
        %1585 = vst.msk [vmem:[#allocation2 + $0x60] sm:$0xff] %vm244, %v1553
        %1586 = vst.msk [vmem:[#allocation2 + $0x68] sm:$0xff] %vm244, %v1554
        %1587 = vst.msk [vmem:[#allocation2 + $0x70] sm:$0xff] %vm244, %v1555
        %1588 = vst.msk [vmem:[#allocation2 + $0x78] sm:$0xff] %vm244, %v1556
        %1589 = vst.msk [vmem:[#allocation2 + $0x80] sm:$0xff] %vm244, %v1557
        %1590 = vst.msk [vmem:[#allocation2 + $0x88] sm:$0xff] %vm244, %v1558
        %1591 = vst.msk [vmem:[#allocation2 + $0x90] sm:$0xff] %vm244, %v1559
        %1592 = vst.msk [vmem:[#allocation2 + $0x98] sm:$0xff] %vm244, %v1560
        %1593 = vst.msk [vmem:[#allocation2 + $0xa0] sm:$0xff] %vm244, %v1561
        %1594 = vst.msk [vmem:[#allocation2 + $0xa8] sm:$0xff] %vm244, %v1562
        %1595 = vst.msk [vmem:[#allocation2 + $0xb0] sm:$0xff] %vm244, %v1563
        %1596 = vst.msk [vmem:[#allocation2 + $0xb8] sm:$0xff] %vm244, %v1564
        %1597 = vst.msk [vmem:[#allocation2 + $0xc0] sm:$0xff] %vm244, %v1565
        %1598 = vst.msk [vmem:[#allocation2 + $0xc8] sm:$0xff] %vm244, %v1566
        %1599 = vst.msk [vmem:[#allocation2 + $0xd0] sm:$0xff] %vm244, %v1567
        %1600 = vst.msk [vmem:[#allocation2 + $0xd8] sm:$0xff] %vm244, %v1568
        %1601 = vst.msk [vmem:[#allocation2 + $0xe0] sm:$0xff] %vm244, %v1569
        %1602 = vst.msk [vmem:[#allocation2 + $0xe8] sm:$0xff] %vm244, %v1570
        %1603 = vst.msk [vmem:[#allocation2 + $0xf0] sm:$0xff] %vm244, %v1571
        %1604 = vst.msk [vmem:[#allocation2 + $0xf8] sm:$0xff] %vm244, %v1572
        %v1605 = vld [vmem:[#allocation2] sm:$0xff]
        %v1606 = vld [vmem:[#allocation2 + $0x8] sm:$0xff]
        %v1607 = vld [vmem:[#allocation2 + $0x10] sm:$0xff]
        %v1608 = vld [vmem:[#allocation2 + $0x18] sm:$0xff]
        %v1609 = vld [vmem:[#allocation2 + $0x20] sm:$0xff]
        %v1610 = vld [vmem:[#allocation2 + $0x28] sm:$0xff]
        %v1611 = vld [vmem:[#allocation2 + $0x30] sm:$0xff]
        %v1612 = vld [vmem:[#allocation2 + $0x38] sm:$0xff]
        %v1613 = vld [vmem:[#allocation2 + $0x40] sm:$0xff]
        %v1614 = vld [vmem:[#allocation2 + $0x48] sm:$0xff]
        %v1615 = vld [vmem:[#allocation2 + $0x50] sm:$0xff]
        %v1616 = vld [vmem:[#allocation2 + $0x58] sm:$0xff]
        %v1617 = vld [vmem:[#allocation2 + $0x60] sm:$0xff]
        %v1618 = vld [vmem:[#allocation2 + $0x68] sm:$0xff]
        %v1619 = vld [vmem:[#allocation2 + $0x70] sm:$0xff]
        %v1620 = vld [vmem:[#allocation2 + $0x78] sm:$0xff]
        %v1621 = vld [vmem:[#allocation2 + $0x80] sm:$0xff]
        %v1622 = vld [vmem:[#allocation2 + $0x88] sm:$0xff]
        %v1623 = vld [vmem:[#allocation2 + $0x90] sm:$0xff]
        %v1624 = vld [vmem:[#allocation2 + $0x98] sm:$0xff]
        %v1625 = vld [vmem:[#allocation2 + $0xa0] sm:$0xff]
        %v1626 = vld [vmem:[#allocation2 + $0xa8] sm:$0xff]
        %v1627 = vld [vmem:[#allocation2 + $0xb0] sm:$0xff]
        %v1628 = vld [vmem:[#allocation2 + $0xb8] sm:$0xff]
        %v1629 = vld [vmem:[#allocation2 + $0xc0] sm:$0xff]
        %v1630 = vld [vmem:[#allocation2 + $0xc8] sm:$0xff]
        %v1631 = vld [vmem:[#allocation2 + $0xd0] sm:$0xff]
        %v1632 = vld [vmem:[#allocation2 + $0xd8] sm:$0xff]
        %v1633 = vld [vmem:[#allocation2 + $0xe0] sm:$0xff]
        %v1634 = vld [vmem:[#allocation2 + $0xe8] sm:$0xff]
        %v1635 = vld [vmem:[#allocation2 + $0xf0] sm:$0xff]
        %v1636 = vld [vmem:[#allocation2 + $0xf8] sm:$0xff]
        %v1637 = vld [vmem:[%s2] sm:$0x1]
        %v1639 = vlaneseq
        %v1640 = vshrl.u32 %v1639, 7
        %v1641 = vsub.s32 0, %v1640
        %v1642 = vrot.slane %v1637, %v1641
        %v1644 = vadd.f32 %v1605, %v1642
        %v1645 = vadd.f32 %v1606, %v1642
        %v1646 = vadd.f32 %v1607, %v1642
        %v1647 = vadd.f32 %v1608, %v1642
        %v1648 = vadd.f32 %v1609, %v1642
        %v1649 = vadd.f32 %v1610, %v1642
        %v1650 = vadd.f32 %v1611, %v1642
        %v1651 = vadd.f32 %v1612, %v1642
        %v1652 = vadd.f32 %v1613, %v1642
        %v1653 = vadd.f32 %v1614, %v1642
        %v1654 = vadd.f32 %v1615, %v1642
        %v1655 = vadd.f32 %v1616, %v1642
        %v1656 = vadd.f32 %v1617, %v1642
        %v1657 = vadd.f32 %v1618, %v1642
        %v1658 = vadd.f32 %v1619, %v1642
        %v1659 = vadd.f32 %v1620, %v1642
        %v1660 = vadd.f32 %v1621, %v1642
        %v1661 = vadd.f32 %v1622, %v1642
        %v1662 = vadd.f32 %v1623, %v1642
        %v1663 = vadd.f32 %v1624, %v1642
        %v1664 = vadd.f32 %v1625, %v1642
        %v1665 = vadd.f32 %v1626, %v1642
        %v1666 = vadd.f32 %v1627, %v1642
        %v1667 = vadd.f32 %v1628, %v1642
        %v1668 = vadd.f32 %v1629, %v1642
        %v1669 = vadd.f32 %v1630, %v1642
        %v1670 = vadd.f32 %v1631, %v1642
        %v1671 = vadd.f32 %v1632, %v1642
        %v1672 = vadd.f32 %v1633, %v1642
        %v1673 = vadd.f32 %v1634, %v1642
        %v1674 = vadd.f32 %v1635, %v1642
        %v1675 = vadd.f32 %v1636, %v1642
        %v1676 = vmax.f32 %v1644, 0.0
        %v1677 = vmax.f32 %v1645, 0.0
        %v1678 = vmax.f32 %v1646, 0.0
        %v1679 = vmax.f32 %v1647, 0.0
        %v1680 = vmax.f32 %v1648, 0.0
        %v1681 = vmax.f32 %v1649, 0.0
        %v1682 = vmax.f32 %v1650, 0.0
        %v1683 = vmax.f32 %v1651, 0.0
        %v1684 = vmax.f32 %v1652, 0.0
        %v1685 = vmax.f32 %v1653, 0.0
        %v1686 = vmax.f32 %v1654, 0.0
        %v1687 = vmax.f32 %v1655, 0.0
        %v1688 = vmax.f32 %v1656, 0.0
        %v1689 = vmax.f32 %v1657, 0.0
        %v1690 = vmax.f32 %v1658, 0.0
        %v1691 = vmax.f32 %v1659, 0.0
        %v1692 = vmax.f32 %v1660, 0.0
        %v1693 = vmax.f32 %v1661, 0.0
        %v1694 = vmax.f32 %v1662, 0.0
        %v1695 = vmax.f32 %v1663, 0.0
        %v1696 = vmax.f32 %v1664, 0.0
        %v1697 = vmax.f32 %v1665, 0.0
        %v1698 = vmax.f32 %v1666, 0.0
        %v1699 = vmax.f32 %v1667, 0.0
        %v1700 = vmax.f32 %v1668, 0.0
        %v1701 = vmax.f32 %v1669, 0.0
        %v1702 = vmax.f32 %v1670, 0.0
        %v1703 = vmax.f32 %v1671, 0.0
        %v1704 = vmax.f32 %v1672, 0.0
        %v1705 = vmax.f32 %v1673, 0.0
        %v1706 = vmax.f32 %v1674, 0.0
        %v1707 = vmax.f32 %v1675, 0.0
        %v1708 = vpack.c.bf16 %v1677, %v1676
        %v1709 = vpack.c.bf16 %v1679, %v1678
        %v1710 = vpack.c.bf16 %v1681, %v1680
        %v1711 = vpack.c.bf16 %v1683, %v1682
        %v1712 = vpack.c.bf16 %v1685, %v1684
        %v1713 = vpack.c.bf16 %v1687, %v1686
        %v1714 = vpack.c.bf16 %v1689, %v1688
        %v1715 = vpack.c.bf16 %v1691, %v1690
        %v1716 = vpack.c.bf16 %v1693, %v1692
        %v1717 = vpack.c.bf16 %v1695, %v1694
        %v1718 = vpack.c.bf16 %v1697, %v1696
        %v1719 = vpack.c.bf16 %v1699, %v1698
        %v1720 = vpack.c.bf16 %v1701, %v1700
        %v1721 = vpack.c.bf16 %v1703, %v1702
        %v1722 = vpack.c.bf16 %v1705, %v1704
        %v1723 = vpack.c.bf16 %v1707, %v1706
        %v1724 = vld [vmem:[%s3] sm:$0xf]
        %v1725 = vld [vmem:[%s3 + $0x4] sm:$0xf]
        %v1726 = vld [vmem:[%s4] sm:$0x1]
        %v1728 = vlaneseq
        %v1729 = vshrl.u32 %v1728, 7
        %v1730 = vsub.s32 0, %v1729
        %v1731 = vrot.slane %v1726, %v1730
        %v1735 = vunpack.c.l.b16 %v1724
        %v1736 = vunpack.c.l.b16 %v1725
        %v1737 = vpack.c.b16 %v1736, %v1735
        %v1740 = vsel %vm244, %v1708, 0
        %v1743 = vsel %vm244, %v1709, 0
        %v1746 = vsel %vm244, %v1710, 0
        %v1749 = vsel %vm244, %v1711, 0
        %v1752 = vsel %vm244, %v1712, 0
        %v1755 = vsel %vm244, %v1713, 0
        %v1758 = vsel %vm244, %v1714, 0
        %v1761 = vsel %vm244, %v1715, 0
        %v1764 = vsel %vm244, %v1716, 0
        %v1767 = vsel %vm244, %v1717, 0
        %v1770 = vsel %vm244, %v1718, 0
        %v1773 = vsel %vm244, %v1719, 0
        %v1776 = vsel %vm244, %v1720, 0
        %v1779 = vsel %vm244, %v1721, 0
        %v1782 = vsel %vm244, %v1722, 0
        %v1785 = vsel %vm244, %v1723, 0
        %1787 = vmatprep.subr.bf16.mxu0 0
        %1788 = vmatpush1.bf16.msra.mxu0 %v1737
        %1789 = vmatprep.subr.bf16.mxu0 0
        %1790 = vmatpush1.bf16.msra.mxu0 0
        %1791 = vmatprep.subr.bf16.mxu0 0
        %1792 = vmatpush1.bf16.msra.mxu0 0
        %1793 = vmatprep.subr.bf16.mxu0 0
        %1794 = vmatpush1.bf16.msra.mxu0 0
        %1795 = vmatprep.subr.bf16.mxu0 0
        %1796 = vmatpush1.bf16.msra.mxu0 0
        %1797 = vmatprep.subr.bf16.mxu0 0
        %1798 = vmatpush1.bf16.msra.mxu0 0
        %1799 = vmatprep.subr.bf16.mxu0 0
        %1800 = vmatpush1.bf16.msra.mxu0 0
        %1801 = vmatprep.subr.bf16.mxu0 0
        %1802 = vmatpush1.bf16.msra.mxu0 0
        %1803 = vmatprep.subr.bf16.mxu0 0
        %1804 = vmatpush1.bf16.msra.mxu0 0
        %1805 = vmatprep.subr.bf16.mxu0 0
        %1806 = vmatpush1.bf16.msra.mxu0 0
        %1807 = vmatprep.subr.bf16.mxu0 0
        %1808 = vmatpush1.bf16.msra.mxu0 0
        %1809 = vmatprep.subr.bf16.mxu0 0
        %1810 = vmatpush1.bf16.msra.mxu0 0
        %1811 = vmatprep.subr.bf16.mxu0 0
        %1812 = vmatpush1.bf16.msra.mxu0 0
        %1813 = vmatprep.subr.bf16.mxu0 0
        %1814 = vmatpush1.bf16.msra.mxu0 0
        %1815 = vmatprep.subr.bf16.mxu0 0
        %1816 = vmatpush1.bf16.msra.mxu0 0
        %1817 = vmatprep.subr.bf16.mxu0 0
        %1818 = vmatpush1.bf16.msra.mxu0 0
        %1819 = vmatprep.mubr.bf16.mxu0 0
        %1820 = vmatmul.mubr.bf16.gmra.mrb[0].mxu0 %v1740
        %v1821 = vpop.f32.mrb[0].mxu0
        %v1822 = vadd.f32 %v1731, %v1821
        %v1823 = vpop.f32.mrb[0].mxu0
        %v1824 = vpop.f32.mrb[0].mxu0
        %v1825 = vadd.f32 %v1731, %v1824
        %v1826 = vpop.f32.mrb[0].mxu0
        %1827 = vmatprep.mubr.bf16.mxu0 0
        %1828 = vmatmul.mubr.bf16.gmra.mrb[0].mxu0 %v1743
        %v1829 = vpop.f32.mrb[0].mxu0
        %v1830 = vadd.f32 %v1731, %v1829
        %v1831 = vpop.f32.mrb[0].mxu0
        %v1832 = vpop.f32.mrb[0].mxu0
        %v1833 = vadd.f32 %v1731, %v1832
        %v1834 = vpop.f32.mrb[0].mxu0
        %1835 = vmatprep.mubr.bf16.mxu0 0
        %1836 = vmatmul.mubr.bf16.gmra.mrb[0].mxu0 %v1746
        %v1837 = vpop.f32.mrb[0].mxu0
        %v1838 = vadd.f32 %v1731, %v1837
        %v1839 = vpop.f32.mrb[0].mxu0
        %v1840 = vpop.f32.mrb[0].mxu0
        %v1841 = vadd.f32 %v1731, %v1840
        %v1842 = vpop.f32.mrb[0].mxu0
        %1843 = vmatprep.mubr.bf16.mxu0 0
        %1844 = vmatmul.mubr.bf16.gmra.mrb[0].mxu0 %v1749
        %v1845 = vpop.f32.mrb[0].mxu0
        %v1846 = vadd.f32 %v1731, %v1845
        %v1847 = vpop.f32.mrb[0].mxu0
        %v1848 = vpop.f32.mrb[0].mxu0
        %v1849 = vadd.f32 %v1731, %v1848
        %v1850 = vpop.f32.mrb[0].mxu0
        %1851 = vmatprep.mubr.bf16.mxu0 0
        %1852 = vmatmul.mubr.bf16.gmra.mrb[0].mxu0 %v1752
        %v1853 = vpop.f32.mrb[0].mxu0
        %v1854 = vadd.f32 %v1731, %v1853
        %v1855 = vpop.f32.mrb[0].mxu0
        %v1856 = vpop.f32.mrb[0].mxu0
        %v1857 = vadd.f32 %v1731, %v1856
        %v1858 = vpop.f32.mrb[0].mxu0
        %1859 = vmatprep.mubr.bf16.mxu0 0
        %1860 = vmatmul.mubr.bf16.gmra.mrb[0].mxu0 %v1755
        %v1861 = vpop.f32.mrb[0].mxu0
        %v1862 = vadd.f32 %v1731, %v1861
        %v1863 = vpop.f32.mrb[0].mxu0
        %v1864 = vpop.f32.mrb[0].mxu0
        %v1865 = vadd.f32 %v1731, %v1864
        %v1866 = vpop.f32.mrb[0].mxu0
        %1867 = vmatprep.mubr.bf16.mxu0 0
        %1868 = vmatmul.mubr.bf16.gmra.mrb[0].mxu0 %v1758
        %v1869 = vpop.f32.mrb[0].mxu0
        %v1870 = vadd.f32 %v1731, %v1869
        %v1871 = vpop.f32.mrb[0].mxu0
        %v1872 = vpop.f32.mrb[0].mxu0
        %v1873 = vadd.f32 %v1731, %v1872
        %v1874 = vpop.f32.mrb[0].mxu0
        %1875 = vmatprep.mubr.bf16.mxu0 0
        %1876 = vmatmul.mubr.bf16.gmra.mrb[0].mxu0 %v1761
        %v1877 = vpop.f32.mrb[0].mxu0
        %v1878 = vadd.f32 %v1731, %v1877
        %v1879 = vpop.f32.mrb[0].mxu0
        %v1880 = vpop.f32.mrb[0].mxu0
        %v1881 = vadd.f32 %v1731, %v1880
        %v1882 = vpop.f32.mrb[0].mxu0
        %1883 = vmatprep.mubr.bf16.mxu0 0
        %1884 = vmatmul.mubr.bf16.gmra.mrb[0].mxu0 %v1764
        %v1885 = vpop.f32.mrb[0].mxu0
        %v1886 = vadd.f32 %v1731, %v1885
        %v1887 = vpop.f32.mrb[0].mxu0
        %v1888 = vpop.f32.mrb[0].mxu0
        %v1889 = vadd.f32 %v1731, %v1888
        %v1890 = vpop.f32.mrb[0].mxu0
        %1891 = vmatprep.mubr.bf16.mxu0 0
        %1892 = vmatmul.mubr.bf16.gmra.mrb[0].mxu0 %v1767
        %v1893 = vpop.f32.mrb[0].mxu0
        %v1894 = vadd.f32 %v1731, %v1893
        %v1895 = vpop.f32.mrb[0].mxu0
        %v1896 = vpop.f32.mrb[0].mxu0
        %v1897 = vadd.f32 %v1731, %v1896
        %v1898 = vpop.f32.mrb[0].mxu0
        %1899 = vmatprep.mubr.bf16.mxu0 0
        %1900 = vmatmul.mubr.bf16.gmra.mrb[0].mxu0 %v1770
        %v1901 = vpop.f32.mrb[0].mxu0
        %v1902 = vadd.f32 %v1731, %v1901
        %v1903 = vpop.f32.mrb[0].mxu0
        %v1904 = vpop.f32.mrb[0].mxu0
        %v1905 = vadd.f32 %v1731, %v1904
        %v1906 = vpop.f32.mrb[0].mxu0
        %1907 = vmatprep.mubr.bf16.mxu0 0
        %1908 = vmatmul.mubr.bf16.gmra.mrb[0].mxu0 %v1773
        %v1909 = vpop.f32.mrb[0].mxu0
        %v1910 = vadd.f32 %v1731, %v1909
        %v1911 = vpop.f32.mrb[0].mxu0
        %v1912 = vpop.f32.mrb[0].mxu0
        %v1913 = vadd.f32 %v1731, %v1912
        %v1914 = vpop.f32.mrb[0].mxu0
        %1915 = vmatprep.mubr.bf16.mxu0 0
        %1916 = vmatmul.mubr.bf16.gmra.mrb[0].mxu0 %v1776
        %v1917 = vpop.f32.mrb[0].mxu0
        %v1918 = vadd.f32 %v1731, %v1917
        %v1919 = vpop.f32.mrb[0].mxu0
        %v1920 = vpop.f32.mrb[0].mxu0
        %v1921 = vadd.f32 %v1731, %v1920
        %v1922 = vpop.f32.mrb[0].mxu0
        %1923 = vmatprep.mubr.bf16.mxu0 0
        %1924 = vmatmul.mubr.bf16.gmra.mrb[0].mxu0 %v1779
        %v1925 = vpop.f32.mrb[0].mxu0
        %v1926 = vadd.f32 %v1731, %v1925
        %v1927 = vpop.f32.mrb[0].mxu0
        %v1928 = vpop.f32.mrb[0].mxu0
        %v1929 = vadd.f32 %v1731, %v1928
        %v1930 = vpop.f32.mrb[0].mxu0
        %1931 = vmatprep.mubr.bf16.mxu0 0
        %1932 = vmatmul.mubr.bf16.gmra.mrb[0].mxu0 %v1782
        %v1933 = vpop.f32.mrb[0].mxu0
        %v1934 = vadd.f32 %v1731, %v1933
        %v1935 = vpop.f32.mrb[0].mxu0
        %v1936 = vpop.f32.mrb[0].mxu0
        %v1937 = vadd.f32 %v1731, %v1936
        %v1938 = vpop.f32.mrb[0].mxu0
        %1939 = vmatprep.mubr.bf16.mxu0 0
        %1940 = vmatmul.mubr.bf16.gmra.mrb[0].mxu0 %v1785
        %v1941 = vpop.f32.mrb[0].mxu0
        %v1942 = vadd.f32 %v1731, %v1941
        %v1943 = vpop.f32.mrb[0].mxu0
        %v1944 = vpop.f32.mrb[0].mxu0
        %v1945 = vadd.f32 %v1731, %v1944
        %v1946 = vpop.f32.mrb[0].mxu0
        %1947 = vdwg.mxu0
        %vm1948 = vcmask 162816
        %1949 = vst.msk [vmem:[%s242] sm:$0xff] %vm1948, %v1822
        %1950 = vst.msk [vmem:[%s242 + $0x8] sm:$0xff] %vm1948, %v1825
        %1951 = vst.msk [vmem:[%s242 + $0x10] sm:$0xff] %vm1948, %v1830
        %1952 = vst.msk [vmem:[%s242 + $0x18] sm:$0xff] %vm1948, %v1833
        %1953 = vst.msk [vmem:[%s242 + $0x20] sm:$0xff] %vm1948, %v1838
        %1954 = vst.msk [vmem:[%s242 + $0x28] sm:$0xff] %vm1948, %v1841
        %1955 = vst.msk [vmem:[%s242 + $0x30] sm:$0xff] %vm1948, %v1846
        %1956 = vst.msk [vmem:[%s242 + $0x38] sm:$0xff] %vm1948, %v1849
        %1957 = vst.msk [vmem:[%s242 + $0x40] sm:$0xff] %vm1948, %v1854
        %1958 = vst.msk [vmem:[%s242 + $0x48] sm:$0xff] %vm1948, %v1857
        %1959 = vst.msk [vmem:[%s242 + $0x50] sm:$0xff] %vm1948, %v1862
        %1960 = vst.msk [vmem:[%s242 + $0x58] sm:$0xff] %vm1948, %v1865
        %1961 = vst.msk [vmem:[%s242 + $0x60] sm:$0xff] %vm1948, %v1870
        %1962 = vst.msk [vmem:[%s242 + $0x68] sm:$0xff] %vm1948, %v1873
        %1963 = vst.msk [vmem:[%s242 + $0x70] sm:$0xff] %vm1948, %v1878
        %1964 = vst.msk [vmem:[%s242 + $0x78] sm:$0xff] %vm1948, %v1881
        %1965 = vst.msk [vmem:[%s242 + $0x80] sm:$0xff] %vm1948, %v1886
        %1966 = vst.msk [vmem:[%s242 + $0x88] sm:$0xff] %vm1948, %v1889
        %1967 = vst.msk [vmem:[%s242 + $0x90] sm:$0xff] %vm1948, %v1894
        %1968 = vst.msk [vmem:[%s242 + $0x98] sm:$0xff] %vm1948, %v1897
        %1969 = vst.msk [vmem:[%s242 + $0xa0] sm:$0xff] %vm1948, %v1902
        %1970 = vst.msk [vmem:[%s242 + $0xa8] sm:$0xff] %vm1948, %v1905
        %1971 = vst.msk [vmem:[%s242 + $0xb0] sm:$0xff] %vm1948, %v1910
        %1972 = vst.msk [vmem:[%s242 + $0xb8] sm:$0xff] %vm1948, %v1913
        %1973 = vst.msk [vmem:[%s242 + $0xc0] sm:$0xff] %vm1948, %v1918
        %1974 = vst.msk [vmem:[%s242 + $0xc8] sm:$0xff] %vm1948, %v1921
        %1975 = vst.msk [vmem:[%s242 + $0xd0] sm:$0xff] %vm1948, %v1926
        %1976 = vst.msk [vmem:[%s242 + $0xd8] sm:$0xff] %vm1948, %v1929
        %1977 = vst.msk [vmem:[%s242 + $0xe0] sm:$0xff] %vm1948, %v1934
        %1978 = vst.msk [vmem:[%s242 + $0xe8] sm:$0xff] %vm1948, %v1937
        %1979 = vst.msk [vmem:[%s242 + $0xf0] sm:$0xff] %vm1948, %v1942
        %1980 = vst.msk [vmem:[%s242 + $0xf8] sm:$0xff] %vm1948, %v1945
        %s1981 = sand.u32 %s140, 1
        %s1982 = scalar_lea.sflag [#allocation5], %s1981
        %s1983 = sand.u32 %s140, 1
        %s1984 = smul.addr %s1983, 256
        %s1985 = scalar_lea.vmem [#allocation6], %s1984
        // Predicated region
        $region45: #{tpu_custom_call.1} parent=39 // pred_check
          %p1986 = pneg %p150
        $region46: #{tpu_custom_call.1} parent=39 // pred_check_branch
          %1988 = sbr.rel (%p1986) target = $region48
        $region47: #{tpu_custom_call.1} parent=39 // pred_region
          %s1990 = ssub.s32 4096, 4096
          %1991 = vsyncadd %s1982, %s1990
          %s1992 = smul.addr %s22, 32
          %s1993 = smul.addr %s1992, 128
          %s1994 = scalar_lea.hbm %s5, %s1993
          %s1995 = sshll.u32 %s1985, 4
          %s1996 = int_to_ptr.vmem [resolvable:$true] %s1995
          %2001 = dma.vmem_to_hbm [thread:$0]  %s1996, 4096, %s1994, %s1982, 128, 128, 8
        $region48: #{tpu_custom_call.1} parent=39 // pred_fallthru
          _
      $region40: #{tpu_custom_call.1} parent=5 // pred_fallthru
        _
      %p2002 = scmp.le.s32.totalorder 2, %s17
      // Predicated region
      $region49: #{tpu_custom_call.1} parent=5 // pred_check
        %p2003 = pneg %p2002
      $region50: #{tpu_custom_call.1} parent=5 // pred_check_branch
        %2005 = sbr.rel (%p2003) target = $region52
      $region51: #{tpu_custom_call.1} parent=5 // pred_region
        %s2006 = ssub.s32 %s17, 2
        // Predicated region
        $region53: #{tpu_custom_call.1} parent=51 // pred_check
          %p2007 = pneg %p156
        $region54: #{tpu_custom_call.1} parent=51 // pred_check_branch
          %2009 = sbr.rel (%p2007) target = $region56
        $region55: #{tpu_custom_call.1} parent=51 // pred_region
          %s2010 = sand.u32 %s141, 1
          %s2011 = scalar_lea.sflag [#allocation5], %s2010
          %s2012 = sand.u32 %s141, 1
          %s2013 = smul.addr %s2012, 256
          %s2014 = scalar_lea.vmem [#allocation6], %s2013
          %2015 = dma.done %s2011, 4096
        $region56: #{tpu_custom_call.1} parent=51 // pred_fallthru
          _
      $region52: #{tpu_custom_call.1} parent=5 // pred_fallthru
        _
    $region6: #{tpu_custom_call.1} parent=1 // loop_footer
      %s21 = sadd.s32 1, %s17
    $region7: #{tpu_custom_call.1} parent=1 // loop_footer_branch
      %16 = sbr.rel target = $region3
    $region8: #{tpu_custom_call.1} parent=1 // loop_exit
      _
    %2016 = vsyncpa [#allocation4], 1
    %s2017 = scalar_lea.sflag [#allocation4], 1
    %2018 = vsyncpa %s2017, 1
    %2019 = vsyncpa [#allocation5], 1
    %s2020 = scalar_lea.sflag [#allocation5], 1
    %2021 = vsyncpa %s2020, 1

</llo_original>
